<compile_context>
chip_gen: v7x
topology: tpu7x:2x2x1
jax: 0.10.0
libtpu: 0.0.40
codegen_flags: <defaults>
</compile_context>

<pallas_src>
import functools

import jax
import jax.numpy as jnp
import numpy as np
from jax.experimental import pallas as pl
from jax.experimental.pallas import tpu as pltpu

EPS = 1e-10


def _ifft_fused_kernel(xr_ref, xi_ref, k_ref, o_ref):
    # complex exp:  exp(r + i*im) = exp(r) * (cos(im) + i*sin(im))
    er = jnp.exp(xr_ref[...] + EPS)
    zr = er * jnp.cos(xi_ref[...] + EPS)
    zi = er * jnp.sin(xi_ref[...] + EPS)
    zcat = jnp.concatenate([zr, zi], axis=1)            # (TB, 2*HW), lane concat
    o_ref[...] = jnp.dot(zcat, k_ref[...], preferred_element_type=jnp.float32)


def _shifted_idft_matrix(n):
    """IDFT matrix with torch.fft.ifftshift (index roll by n//2) folded in.

    F[m, j] = exp(2*pi*i * m * (j - n//2) / n) / n  -> returned as (real, imag).
    """
    m = jnp.arange(n, dtype=jnp.float32)[:, None]
    j = jnp.arange(n, dtype=jnp.float32)[None, :]
    ang = 2.0 * jnp.pi * m * (j - float(n // 2)) / float(n)
    return jnp.cos(ang) / n, jnp.sin(ang) / n


def _shifted_kron_operator(h, w):
    """K = F_H_shift (x) F_W_shift (complex), returned transposed as (Ktr, Kti).

    Out = F_H @ Z @ F_W^T  <=>  Out_flat = Z_flat @ K^T  (row-major flattening),
    so  out_real = Zr @ Ktr - Zi @ Kti,   out_imag = Zr @ Kti + Zi @ Ktr.
    """
    fhr, fhi = _shifted_idft_matrix(h)
    fwr, fwi = _shifted_idft_matrix(w)
    kr = jnp.kron(fhr, fwr) - jnp.kron(fhi, fwi)
    ki = jnp.kron(fhr, fwi) + jnp.kron(fhi, fwr)
    return kr.T, ki.T                                   # (HW, HW) each


def _round_up(x, m):
    return -(-x // m) * m


def _mxu_m_tile():
    # 256-wide M tile on the 2x256x256 MXU generations (v6e/v7x), 128 otherwise.
    try:
        kind = jax.devices()[0].device_kind.lower()
    except Exception:
        return 256
    return 128 if any(v in kind for v in ("v2", "v3", "v4", "v5")) else 256


@functools.partial(jax.jit, static_argnames=("image_space_real",))
def ifft_module(x, image_space_real=True):
    """x: (B, C, H, W, 2) float32 -> (B, C, H, W) or (B, C, H, W, 2)."""
    B, C, H, W, _ = x.shape
    N, HW = B * C, H * W
    if HW > 1024:
        # TODO(synk): two-stage batched-rows formulation ((TB*H,W)@Fw^T then
        # (TB*W,H)@Fh^T) for H*W > 1024, where the (2*HW, HW)-ish Kronecker
        # operator no longer fits comfortably in VMEM (esp. v7x's 64 MiB).
        raise NotImplementedError("Kronecker IFFT path requires H*W <= 1024")

    # TODO(synk): accept a pre-planarized (2, N, HW) layout (or fold the
    # even/odd lane split into the kernel) to skip this extra HBM pass once the
    # batch is big enough for the call to be HBM-bound.
    xr = x[..., 0].astype(jnp.float32).reshape(N, HW)
    xi = x[..., 1].astype(jnp.float32).reshape(N, HW)

    ktr, kti = _shifted_kron_operator(H, W)
    if image_space_real:
        # [zr|zi] @ [[Ktr],[-Kti]] = zr@Ktr - zi@Kti   (imaginary plane skipped)
        kmat = jnp.concatenate([ktr, -kti], axis=0)                  # (2*HW, HW)
    else:
        # [zr|zi] @ [[Ktr, Kti],[-Kti, Ktr]] = [real | imag]  (no cancellation)
        # TODO(synk): for very large MXU-bound batches on v5e the Gauss 3-mult
        # complex matmul saves 25% MACs but reintroduces cancellation in imag.
        kmat = jnp.concatenate(
            [jnp.concatenate([ktr, kti], axis=1),
             jnp.concatenate([-kti, ktr], axis=1)], axis=0)          # (2*HW, 2*HW)
    wout = kmat.shape[1]

    # Batch tiling: fill the native MXU M tile, pad the batch only to a
    # multiple of 8 and spread rows evenly across grid steps (minimal padding).
    cap = _mxu_m_tile()
    n8 = _round_up(N, 8)
    steps = -(-n8 // cap)
    TB = _round_up(-(-n8 // steps), 8)
    Np = steps * TB
    pad = Np - N
    if pad:
        xr = jnp.pad(xr, ((0, pad), (0, 0)))
        xi = jnp.pad(xi, ((0, pad), (0, 0)))

    # Column split so the grid never collapses to a single step (keeps both
    # v7x TensorCores busy for tiny batches).  Only when each half stays a
    # multiple of 128 lanes.
    NC = 2 if (steps == 1 and wout % 256 == 0) else 1
    wblk = wout // NC

    img_spec = pl.BlockSpec((TB, HW), lambda n, c: (n, 0))
    mat_spec = pl.BlockSpec((2 * HW, wblk), lambda n, c: (0, c),
                            pipeline_mode=pl.Buffered(1))   # grid-invariant -> 1 buffer
    out_spec = pl.BlockSpec((TB, wblk), lambda n, c: (n, c))

    # Right-sized VMEM limit: xr/xi double-buffered, K single-buffered,
    # output double-buffered, plus headroom; capped for v7x's 64 MiB VMEM.
    footprint = (2 * 2 * TB * HW * 4          # xr, xi tiles (double-buffered)
                 + 1 * 2 * HW * wblk * 4      # K column block (single-buffered)
                 + 2 * TB * wblk * 4)         # output tile (double-buffered)
    vmem_limit = int(min(32 * 1024 * 1024,
                         max(8 * 1024 * 1024, 2 * footprint + 2 * 1024 * 1024)))

    out = pl.pallas_call(
        _ifft_fused_kernel,
        grid=(steps, NC),
        in_specs=[img_spec, img_spec, mat_spec],
        out_specs=out_spec,
        out_shape=jax.ShapeDtypeStruct((Np, wout), jnp.float32),
        compiler_params=pltpu.CompilerParams(
            dimension_semantics=("parallel", "parallel"),
            vmem_limit_bytes=vmem_limit),
    )(xr, xi, kmat)

    if image_space_real:
        return out[:N].reshape(B, C, H, W)
    out_r = out[:N, :HW].reshape(B, C, H, W)
    out_i = out[:N, HW:].reshape(B, C, H, W)
    return jnp.stack([out_r, out_i], axis=-1)


def _reference(x, image_space_real):
    real = x[..., 0].astype(jnp.float32) + EPS
    imag = x[..., 1].astype(jnp.float32) + EPS
    z = jnp.exp(real + 1j * imag)
    y = jnp.fft.ifft2(jnp.fft.ifftshift(z, axes=(-2, -1)))
    if image_space_real:
        return jnp.real(y)
    return jnp.stack([jnp.real(y), jnp.imag(y)], axis=-1)


if __name__ == "__main__":
    key = jax.random.PRNGKey(0)
    B, C, H, W = 2, 4, 16, 16
    x = jax.random.normal(key, (B, C, H, W, 2), dtype=jnp.float32)

    # parameters['image_space_real'] analogue — check both branches.
    for image_space_real in (True, False):
        out = ifft_module(x, image_space_real=image_space_real)
        out = jax.block_until_ready(out)
        ref = _reference(x, image_space_real)
        np.testing.assert_allclose(np.asarray(out), np.asarray(ref),
                                   rtol=1e-4, atol=1e-4)

    print("KERNEL_OK")
</pallas_src>

<mosaic_0001>
module attributes {stable_mosaic.version = 11 : i64} {
  func.func @_ifft_fused_kernel(%arg0: i32, %arg1: i32, %arg2: memref<8x256xf32, #tpu.memory_space<vmem>>, %arg3: memref<8x256xf32, #tpu.memory_space<vmem>>, %arg4: memref<512x128xf32, #tpu.memory_space<vmem>>, %arg5: memref<8x128xf32, #tpu.memory_space<vmem>>) attributes {dimension_semantics = [#tpu.dimension_semantics<parallel>, #tpu.dimension_semantics<parallel>], iteration_bounds = array<i64: 1, 2>, scalar_prefetch = 0 : i64, scratch_operands = 0 : i64, tpu.core_type = #tpu.core_type<tc>, window_params = [{transform_indices = @transform_0, window_bounds = array<i64: 8, 256>}, {transform_indices = @transform_1, window_bounds = array<i64: 8, 256>}, {pipeline_mode = #tpu.pipeline_mode<synchronous>, transform_indices = @transform_2, window_bounds = array<i64: 512, 128>}, {transform_indices = @transform_3, window_bounds = array<i64: 8, 128>}]} {
    %c0 = arith.constant 0 : index
    %c0_0 = arith.constant 0 : index
    %0 = vector.load %arg2[%c0, %c0_0] : memref<8x256xf32, #tpu.memory_space<vmem>>, vector<8x256xf32>
    %cst = arith.constant 1.000000e-10 : f32
    %1 = vector.broadcast %cst : f32 to vector<8x256xf32>
    %2 = arith.addf %0, %1 : vector<8x256xf32>
    %3 = math.exp %2 : vector<8x256xf32>
    %c0_1 = arith.constant 0 : index
    %c0_2 = arith.constant 0 : index
    %4 = vector.load %arg3[%c0_1, %c0_2] : memref<8x256xf32, #tpu.memory_space<vmem>>, vector<8x256xf32>
    %cst_3 = arith.constant 1.000000e-10 : f32
    %5 = vector.broadcast %cst_3 : f32 to vector<8x256xf32>
    %6 = arith.addf %4, %5 : vector<8x256xf32>
    %7 = math.cos %6 : vector<8x256xf32>
    %8 = arith.mulf %3, %7 : vector<8x256xf32>
    %c0_4 = arith.constant 0 : index
    %c0_5 = arith.constant 0 : index
    %9 = vector.load %arg3[%c0_4, %c0_5] : memref<8x256xf32, #tpu.memory_space<vmem>>, vector<8x256xf32>
    %cst_6 = arith.constant 1.000000e-10 : f32
    %10 = vector.broadcast %cst_6 : f32 to vector<8x256xf32>
    %11 = arith.addf %9, %10 : vector<8x256xf32>
    %12 = math.sin %11 : vector<8x256xf32>
    %13 = arith.mulf %3, %12 : vector<8x256xf32>
    %14 = tpu.concatenate %8, %13 in 1 : vector<8x256xf32>, vector<8x256xf32> -> vector<8x512xf32>
    %c0_7 = arith.constant 0 : index
    %c0_8 = arith.constant 0 : index
    %15 = vector.load %arg4[%c0_7, %c0_8] : memref<512x128xf32, #tpu.memory_space<vmem>>, vector<512x128xf32>
    %cst_9 = arith.constant dense<0.000000e+00> : vector<8x128xf32>
    %16 = tpu.matmul %14, %15, %cst_9 {dimension_numbers = #tpu.dot_dimension_numbers<[1], [0], [0], [1], [0, 0, 1, 1], [], []>} : vector<8x512xf32>, vector<512x128xf32>, vector<8x128xf32> -> vector<8x128xf32>
    %c0_10 = arith.constant 0 : index
    %c0_11 = arith.constant 0 : index
    %17 = vector.load %arg5[%c0_10, %c0_11] : memref<8x128xf32, #tpu.memory_space<vmem>>, vector<8x128xf32>
    tpu.vector_store %arg5[%c0_10, %c0_11], %16 {strides = array<i32>} : memref<8x128xf32, #tpu.memory_space<vmem>>, vector<8x128xf32>,
    return
  }
  func.func @transform_0(%arg0: i32, %arg1: i32) -> (i32, i32) {
    %c0_i32 = arith.constant 0 : i32
    %c0_i32_0 = arith.constant 0 : i32
    return %arg0, %c0_i32 : i32, i32
  }
  func.func @transform_1(%arg0: i32, %arg1: i32) -> (i32, i32) {
    %c0_i32 = arith.constant 0 : i32
    %c0_i32_0 = arith.constant 0 : i32
    return %arg0, %c0_i32 : i32, i32
  }
  func.func @transform_2(%arg0: i32, %arg1: i32) -> (i32, i32) {
    %c0_i32 = arith.constant 0 : i32
    %c0_i32_0 = arith.constant 0 : i32
    return %c0_i32, %arg1 : i32, i32
  }
  func.func @transform_3(%arg0: i32, %arg1: i32) -> (i32, i32) {
    %c0_i32 = arith.constant 0 : i32
    return %arg0, %arg1 : i32, i32
  }
}

</mosaic_0001>

<llo_original>
// kernel: squeeze.2
$region0: #{squeeze.2}
  %s0 = inlined_call_operand.vmem [shape: f32[2,4,16,16], index: 0, kind: input, shape index: {}]
  %s1 = inlined_call_operand.vmem [shape: f32[8,256], index: 1, kind: output, shape index: {}]
  %v2 = vld [vmem:[%s0] ss:$8 sm:$0xf]
  %v3 = vld [vmem:[%s0] ss:$8 sm:$0xf0]
  %vm4 = vcmask 1047556
  %v5 = vsel %vm4, %v3, %v2
  %vm6 = vcmask 130048
  %7 = vst.msk [vmem:[%s1] ss:$8 sm:$0x3] %vm6, %v5
  %s8 = scalar_lea.vmem %s1, 4294967281
  %9 = vst.msk [vmem:[%s8] ss:$8 sm:$0xc] %vm6, %v5
  %s10 = scalar_lea.vmem %s1, 4294967266
  %11 = vst.msk [vmem:[%s10] ss:$8 sm:$0x30] %vm6, %v5
  %s12 = scalar_lea.vmem %s1, 4294967251
  %13 = vst.msk [vmem:[%s12] ss:$8 sm:$0xc0] %vm6, %v5
  %s14 = scalar_lea.vmem %s0, 64
  %v15 = vld [vmem:[%s14] ss:$8 sm:$0xf]
  %s16 = scalar_lea.vmem %s0, 64
  %v17 = vld [vmem:[%s16] ss:$8 sm:$0xf0]
  %vm18 = vcmask 1047556
  %v19 = vsel %vm18, %v17, %v15
  %vm20 = vcmask 130048
  %s21 = scalar_lea.vmem %s1, 4
  %22 = vst.msk [vmem:[%s21] ss:$8 sm:$0x3] %vm20, %v19
  %s23 = scalar_lea.vmem %s1, 4294967285
  %24 = vst.msk [vmem:[%s23] ss:$8 sm:$0xc] %vm20, %v19
  %s25 = scalar_lea.vmem %s1, 4294967270
  %26 = vst.msk [vmem:[%s25] ss:$8 sm:$0x30] %vm20, %v19
  %s27 = scalar_lea.vmem %s1, 4294967255
  %28 = vst.msk [vmem:[%s27] ss:$8 sm:$0xc0] %vm20, %v19
  %s29 = scalar_lea.vmem %s0, 7
  %s30 = smov 3
  %v31 = vld [vmem:[%s29] ss:$16 sm:%s30]
  %s32 = scalar_lea.vmem %s0, 7
  %s33 = smov 12
  %v34 = vld [vmem:[%s32] ss:$16 sm:%s33]
  %vm35 = vcmask 1043458
  %v36 = vsel %vm35, %v34, %v31
  %s37 = scalar_lea.vmem %s0, 7
  %s38 = smov 48
  %v39 = vld [vmem:[%s37] ss:$16 sm:%s38]
  %vm40 = vcmask 1045508
  %v41 = vsel %vm40, %v39, %v36
  %s42 = scalar_lea.vmem %s0, 7
  %s43 = smov 192
  %v44 = vld [vmem:[%s42] ss:$16 sm:%s43]
  %vm45 = vcmask 1047558
  %v46 = vsel %vm45, %v44, %v41
  %47 = vrot.lane.b32.xlu0 %v46, 112
  %v48 = vpop.permute.xlu0 %47
  %vm49 = vcmask 1048448
  %50 = vst.msk [vmem:[%s1] sm:$0xff] %vm49, %v48
  %s51 = scalar_lea.vmem %s0, 15
  %s52 = smov 3
  %v53 = vld [vmem:[%s51] ss:$16 sm:%s52]
  %s54 = scalar_lea.vmem %s0, 15
  %s55 = smov 12
  %v56 = vld [vmem:[%s54] ss:$16 sm:%s55]
  %vm57 = vcmask 1043458
  %v58 = vsel %vm57, %v56, %v53
  %s59 = scalar_lea.vmem %s0, 15
  %s60 = smov 48
  %v61 = vld [vmem:[%s59] ss:$16 sm:%s60]
  %vm62 = vcmask 1045508
  %v63 = vsel %vm62, %v61, %v58
  %s64 = scalar_lea.vmem %s0, 15
  %s65 = smov 192
  %v66 = vld [vmem:[%s64] ss:$16 sm:%s65]
  %vm67 = vcmask 1047558
  %v68 = vsel %vm67, %v66, %v63
  %69 = vrot.lane.b32.xlu0 %v68, 112
  %v70 = vpop.permute.xlu0 %69
  %vm71 = vcmask 1048448
  %s72 = scalar_lea.vmem %s1, 8
  %73 = vst.msk [vmem:[%s72] sm:$0xff] %vm71, %v70
  %s74 = scalar_lea.vmem %s0, 6
  %s75 = smov 3
  %v76 = vld [vmem:[%s74] ss:$16 sm:%s75]
  %s77 = scalar_lea.vmem %s0, 6
  %s78 = smov 12
  %v79 = vld [vmem:[%s77] ss:$16 sm:%s78]
  %vm80 = vcmask 1043458
  %v81 = vsel %vm80, %v79, %v76
  %s82 = scalar_lea.vmem %s0, 6
  %s83 = smov 48
  %v84 = vld [vmem:[%s82] ss:$16 sm:%s83]
  %vm85 = vcmask 1045508
  %v86 = vsel %vm85, %v84, %v81
  %s87 = scalar_lea.vmem %s0, 6
  %s88 = smov 192
  %v89 = vld [vmem:[%s87] ss:$16 sm:%s88]
  %vm90 = vcmask 1047558
  %v91 = vsel %vm90, %v89, %v86
  %92 = vrot.lane.b32.xlu0 %v91, 96
  %v93 = vpop.permute.xlu0 %92
  %vm94 = vcmask 917248
  %95 = vst.msk [vmem:[%s1] sm:$0xff] %vm94, %v93
  %s96 = scalar_lea.vmem %s0, 14
  %s97 = smov 3
  %v98 = vld [vmem:[%s96] ss:$16 sm:%s97]
  %s99 = scalar_lea.vmem %s0, 14
  %s100 = smov 12
  %v101 = vld [vmem:[%s99] ss:$16 sm:%s100]
  %vm102 = vcmask 1043458
  %v103 = vsel %vm102, %v101, %v98
  %s104 = scalar_lea.vmem %s0, 14
  %s105 = smov 48
  %v106 = vld [vmem:[%s104] ss:$16 sm:%s105]
  %vm107 = vcmask 1045508
  %v108 = vsel %vm107, %v106, %v103
  %s109 = scalar_lea.vmem %s0, 14
  %s110 = smov 192
  %v111 = vld [vmem:[%s109] ss:$16 sm:%s110]
  %vm112 = vcmask 1047558
  %v113 = vsel %vm112, %v111, %v108
  %114 = vrot.lane.b32.xlu0 %v113, 96
  %v115 = vpop.permute.xlu0 %114
  %vm116 = vcmask 917248
  %s117 = scalar_lea.vmem %s1, 8
  %118 = vst.msk [vmem:[%s117] sm:$0xff] %vm116, %v115
  %s119 = scalar_lea.vmem %s0, 5
  %s120 = smov 3
  %v121 = vld [vmem:[%s119] ss:$16 sm:%s120]
  %s122 = scalar_lea.vmem %s0, 5
  %s123 = smov 12
  %v124 = vld [vmem:[%s122] ss:$16 sm:%s123]
  %vm125 = vcmask 1043458
  %v126 = vsel %vm125, %v124, %v121
  %s127 = scalar_lea.vmem %s0, 5
  %s128 = smov 48
  %v129 = vld [vmem:[%s127] ss:$16 sm:%s128]
  %vm130 = vcmask 1045508
  %v131 = vsel %vm130, %v129, %v126
  %s132 = scalar_lea.vmem %s0, 5
  %s133 = smov 192
  %v134 = vld [vmem:[%s132] ss:$16 sm:%s133]
  %vm135 = vcmask 1047558
  %v136 = vsel %vm135, %v134, %v131
  %137 = vrot.lane.b32.xlu0 %v136, 80
  %v138 = vpop.permute.xlu0 %137
  %vm139 = vcmask 786048
  %140 = vst.msk [vmem:[%s1] sm:$0xff] %vm139, %v138
  %s141 = scalar_lea.vmem %s0, 13
  %s142 = smov 3
  %v143 = vld [vmem:[%s141] ss:$16 sm:%s142]
  %s144 = scalar_lea.vmem %s0, 13
  %s145 = smov 12
  %v146 = vld [vmem:[%s144] ss:$16 sm:%s145]
  %vm147 = vcmask 1043458
  %v148 = vsel %vm147, %v146, %v143
  %s149 = scalar_lea.vmem %s0, 13
  %s150 = smov 48
  %v151 = vld [vmem:[%s149] ss:$16 sm:%s150]
  %vm152 = vcmask 1045508
  %v153 = vsel %vm152, %v151, %v148
  %s154 = scalar_lea.vmem %s0, 13
  %s155 = smov 192
  %v156 = vld [vmem:[%s154] ss:$16 sm:%s155]
  %vm157 = vcmask 1047558
  %v158 = vsel %vm157, %v156, %v153
  %159 = vrot.lane.b32.xlu0 %v158, 80
  %v160 = vpop.permute.xlu0 %159
  %vm161 = vcmask 786048
  %s162 = scalar_lea.vmem %s1, 8
  %163 = vst.msk [vmem:[%s162] sm:$0xff] %vm161, %v160
  %s164 = scalar_lea.vmem %s0, 4
  %s165 = smov 3
  %v166 = vld [vmem:[%s164] ss:$16 sm:%s165]
  %s167 = scalar_lea.vmem %s0, 4
  %s168 = smov 12
  %v169 = vld [vmem:[%s167] ss:$16 sm:%s168]
  %vm170 = vcmask 1043458
  %v171 = vsel %vm170, %v169, %v166
  %s172 = scalar_lea.vmem %s0, 4
  %s173 = smov 48
  %v174 = vld [vmem:[%s172] ss:$16 sm:%s173]
  %vm175 = vcmask 1045508
  %v176 = vsel %vm175, %v174, %v171
  %s177 = scalar_lea.vmem %s0, 4
  %s178 = smov 192
  %v179 = vld [vmem:[%s177] ss:$16 sm:%s178]
  %vm180 = vcmask 1047558
  %v181 = vsel %vm180, %v179, %v176
  %182 = vrot.lane.b32.xlu0 %v181, 64
  %v183 = vpop.permute.xlu0 %182
  %vm184 = vcmask 654848
  %185 = vst.msk [vmem:[%s1] sm:$0xff] %vm184, %v183
  %s186 = scalar_lea.vmem %s0, 12
  %s187 = smov 3
  %v188 = vld [vmem:[%s186] ss:$16 sm:%s187]
  %s189 = scalar_lea.vmem %s0, 12
  %s190 = smov 12
  %v191 = vld [vmem:[%s189] ss:$16 sm:%s190]
  %vm192 = vcmask 1043458
  %v193 = vsel %vm192, %v191, %v188
  %s194 = scalar_lea.vmem %s0, 12
  %s195 = smov 48
  %v196 = vld [vmem:[%s194] ss:$16 sm:%s195]
  %vm197 = vcmask 1045508
  %v198 = vsel %vm197, %v196, %v193
  %s199 = scalar_lea.vmem %s0, 12
  %s200 = smov 192
  %v201 = vld [vmem:[%s199] ss:$16 sm:%s200]
  %vm202 = vcmask 1047558
  %v203 = vsel %vm202, %v201, %v198
  %204 = vrot.lane.b32.xlu0 %v203, 64
  %v205 = vpop.permute.xlu0 %204
  %vm206 = vcmask 654848
  %s207 = scalar_lea.vmem %s1, 8
  %208 = vst.msk [vmem:[%s207] sm:$0xff] %vm206, %v205
  %s209 = scalar_lea.vmem %s0, 3
  %s210 = smov 3
  %v211 = vld [vmem:[%s209] ss:$16 sm:%s210]
  %s212 = scalar_lea.vmem %s0, 3
  %s213 = smov 12
  %v214 = vld [vmem:[%s212] ss:$16 sm:%s213]
  %vm215 = vcmask 1043458
  %v216 = vsel %vm215, %v214, %v211
  %s217 = scalar_lea.vmem %s0, 3
  %s218 = smov 48
  %v219 = vld [vmem:[%s217] ss:$16 sm:%s218]
  %vm220 = vcmask 1045508
  %v221 = vsel %vm220, %v219, %v216
  %s222 = scalar_lea.vmem %s0, 3
  %s223 = smov 192
  %v224 = vld [vmem:[%s222] ss:$16 sm:%s223]
  %vm225 = vcmask 1047558
  %v226 = vsel %vm225, %v224, %v221
  %227 = vrot.lane.b32.xlu0 %v226, 48
  %v228 = vpop.permute.xlu0 %227
  %vm229 = vcmask 523648
  %230 = vst.msk [vmem:[%s1] sm:$0xff] %vm229, %v228
  %s231 = scalar_lea.vmem %s0, 11
  %s232 = smov 3
  %v233 = vld [vmem:[%s231] ss:$16 sm:%s232]
  %s234 = scalar_lea.vmem %s0, 11
  %s235 = smov 12
  %v236 = vld [vmem:[%s234] ss:$16 sm:%s235]
  %vm237 = vcmask 1043458
  %v238 = vsel %vm237, %v236, %v233
  %s239 = scalar_lea.vmem %s0, 11
  %s240 = smov 48
  %v241 = vld [vmem:[%s239] ss:$16 sm:%s240]
  %vm242 = vcmask 1045508
  %v243 = vsel %vm242, %v241, %v238
  %s244 = scalar_lea.vmem %s0, 11
  %s245 = smov 192
  %v246 = vld [vmem:[%s244] ss:$16 sm:%s245]
  %vm247 = vcmask 1047558
  %v248 = vsel %vm247, %v246, %v243
  %249 = vrot.lane.b32.xlu0 %v248, 48
  %v250 = vpop.permute.xlu0 %249
  %vm251 = vcmask 523648
  %s252 = scalar_lea.vmem %s1, 8
  %253 = vst.msk [vmem:[%s252] sm:$0xff] %vm251, %v250
  %s254 = scalar_lea.vmem %s0, 2
  %s255 = smov 3
  %v256 = vld [vmem:[%s254] ss:$16 sm:%s255]
  %s257 = scalar_lea.vmem %s0, 2
  %s258 = smov 12
  %v259 = vld [vmem:[%s257] ss:$16 sm:%s258]
  %vm260 = vcmask 1043458
  %v261 = vsel %vm260, %v259, %v256
  %s262 = scalar_lea.vmem %s0, 2
  %s263 = smov 48
  %v264 = vld [vmem:[%s262] ss:$16 sm:%s263]
  %vm265 = vcmask 1045508
  %v266 = vsel %vm265, %v264, %v261
  %s267 = scalar_lea.vmem %s0, 2
  %s268 = smov 192
  %v269 = vld [vmem:[%s267] ss:$16 sm:%s268]
  %vm270 = vcmask 1047558
  %v271 = vsel %vm270, %v269, %v266
  %272 = vrot.lane.b32.xlu0 %v271, 32
  %v273 = vpop.permute.xlu0 %272
  %vm274 = vcmask 392448
  %275 = vst.msk [vmem:[%s1] sm:$0xff] %vm274, %v273
  %s276 = scalar_lea.vmem %s0, 10
  %s277 = smov 3
  %v278 = vld [vmem:[%s276] ss:$16 sm:%s277]
  %s279 = scalar_lea.vmem %s0, 10
  %s280 = smov 12
  %v281 = vld [vmem:[%s279] ss:$16 sm:%s280]
  %vm282 = vcmask 1043458
  %v283 = vsel %vm282, %v281, %v278
  %s284 = scalar_lea.vmem %s0, 10
  %s285 = smov 48
  %v286 = vld [vmem:[%s284] ss:$16 sm:%s285]
  %vm287 = vcmask 1045508
  %v288 = vsel %vm287, %v286, %v283
  %s289 = scalar_lea.vmem %s0, 10
  %s290 = smov 192
  %v291 = vld [vmem:[%s289] ss:$16 sm:%s290]
  %vm292 = vcmask 1047558
  %v293 = vsel %vm292, %v291, %v288
  %294 = vrot.lane.b32.xlu0 %v293, 32
  %v295 = vpop.permute.xlu0 %294
  %vm296 = vcmask 392448
  %s297 = scalar_lea.vmem %s1, 8
  %298 = vst.msk [vmem:[%s297] sm:$0xff] %vm296, %v295
  %s299 = scalar_lea.vmem %s0, 1
  %s300 = smov 3
  %v301 = vld [vmem:[%s299] ss:$16 sm:%s300]
  %s302 = scalar_lea.vmem %s0, 1
  %s303 = smov 12
  %v304 = vld [vmem:[%s302] ss:$16 sm:%s303]
  %vm305 = vcmask 1043458
  %v306 = vsel %vm305, %v304, %v301
  %s307 = scalar_lea.vmem %s0, 1
  %s308 = smov 48
  %v309 = vld [vmem:[%s307] ss:$16 sm:%s308]
  %vm310 = vcmask 1045508
  %v311 = vsel %vm310, %v309, %v306
  %s312 = scalar_lea.vmem %s0, 1
  %s313 = smov 192
  %v314 = vld [vmem:[%s312] ss:$16 sm:%s313]
  %vm315 = vcmask 1047558
  %v316 = vsel %vm315, %v314, %v311
  %317 = vrot.lane.b32.xlu0 %v316, 16
  %v318 = vpop.permute.xlu0 %317
  %vm319 = vcmask 261248
  %320 = vst.msk [vmem:[%s1] sm:$0xff] %vm319, %v318
  %s321 = scalar_lea.vmem %s0, 9
  %s322 = smov 3
  %v323 = vld [vmem:[%s321] ss:$16 sm:%s322]
  %s324 = scalar_lea.vmem %s0, 9
  %s325 = smov 12
  %v326 = vld [vmem:[%s324] ss:$16 sm:%s325]
  %vm327 = vcmask 1043458
  %v328 = vsel %vm327, %v326, %v323
  %s329 = scalar_lea.vmem %s0, 9
  %s330 = smov 48
  %v331 = vld [vmem:[%s329] ss:$16 sm:%s330]
  %vm332 = vcmask 1045508
  %v333 = vsel %vm332, %v331, %v328
  %s334 = scalar_lea.vmem %s0, 9
  %s335 = smov 192
  %v336 = vld [vmem:[%s334] ss:$16 sm:%s335]
  %vm337 = vcmask 1047558
  %v338 = vsel %vm337, %v336, %v333
  %339 = vrot.lane.b32.xlu0 %v338, 16
  %v340 = vpop.permute.xlu0 %339
  %vm341 = vcmask 261248
  %s342 = scalar_lea.vmem %s1, 8
  %343 = vst.msk [vmem:[%s342] sm:$0xff] %vm341, %v340

// kernel: ifft_module.1
$region0: #{ifft_module.1}
  #allocation0 [shape = 'u32[]', space=smem, size = 0x4, offset = 0x4, fixed_abs, tag = 'smem constant byte address 0x4 - core index']
  #allocation1 [shape = 'u32[144,128]{1,0:T(1,128)}', space=vmem, size = 0x12000, scoped, tag = 'internal scratch']
  %s0 = inlined_call_operand.vmem [shape: f32[8,256], index: 0, kind: input, shape index: {}]
  %s1 = inlined_call_operand.vmem [shape: f32[8,256], index: 1, kind: input, shape index: {}]
  %s2 = inlined_call_operand.vmem [shape: f32[512,256], index: 2, kind: input, shape index: {}]
  %s3 = inlined_call_operand.vmem [shape: f32[8,256], index: 3, kind: output, shape index: {}]
  %s4 = sld [smem:[#allocation0]]
  $region83: #{ifft_module.1} parent=0
    _
  %s6 = ssub.s32 1, %s4
  %s7 = scalar_select 0, %s6, %s4
  $region1: #{ifft_module.1} parent=0
    #allocation2 [shape = 'u8[262144]{0}', space=vmem, size = 0x40000, scoped, tag = 'input window, operand 2, single buffered']
    loop: start=0, step=1, limit=4
    $region2: #{ifft_module.1} parent=1 // loop_pre_header
      _
    $region3: #{ifft_module.1} parent=1 // loop_header
      %s9 = sphi 0, %s13
      %p10 = scmp.ge.s32.totalorder %s9, 4
      %s16 = sphi 0, %s28
      %s17 = sphi 0, %s24
      %s18 = sphi 0, %s16
      %s19 = sphi 0, %s17
      %s20 = sphi 0, %s18
      %s21 = sphi 0, %s19
      %s31 = sphi 0, %s33
      %s34 = sphi 0, %s31
      %s35 = sphi 0, %s34
      %s51 = sphi 0, %s35
      %s57 = sphi 0, %s59
      %s60 = sphi 0, %s57
      %s61 = sphi 0, %s60
      %s77 = sphi 0, %s61
      %s83 = sphi 0, %s85
      %s86 = sphi 0, %s83
      %s87 = sphi 0, %s86
      %s103 = sphi 0, %s87
      %s111 = sphi 0, %s113
      %s114 = sphi 0, %s111
      %s115 = sphi 0, %s114
      %s131 = sphi 0, %s115
    $region4: #{ifft_module.1} parent=1 // loop_header_branch
      %12 = sbr.rel (%p10) target = $region8
    $region5: #{ifft_module.1} parent=1 // loop_body
      %s14 = ssub.s32 %s9, 1
      %s15 = ssub.s32 %s9, 2
      %s22 = sadd.s32 1, %s17
      %p23 = scmp.ge.s32.totalorder %s22, 2
      %s24 = scalar_select %p23, 0, %s22
      %s25 = sadd.s32 1, %s16
      %s26 = scalar_select %p23, %s25, %s16
      %p27 = scmp.ge.s32.totalorder %s26, 1
      %s28 = scalar_select %p27, 0, %s26
      %s29 = ssub.s32 %s16, %s28
      %p30 = scmp.eq.s32.totalorder %s29, 0
      %s32 = sadd.s32 %s31, 1
      %s33 = scalar_select %p30, %s31, %s32
      %p36 = pneg %p30
      %p37 = scmp.eq.s32.totalorder %s9, 1
      %p38 = por %p36, %p37
      %p39 = scmp.ne.s32.totalorder %s31, %s34
      %p40 = scmp.eq.s32.totalorder %s9, 0
      %p41 = por %p39, %p40
      %p42 = scmp.ne.s32.totalorder %s31, %s34
      %p43 = scmp.eq.s32.totalorder %s14, 1
      %p44 = por %p42, %p43
      %p45 = scmp.ne.s32.totalorder %s34, %s35
      %p46 = scmp.eq.s32.totalorder %s14, 0
      %p47 = por %p45, %p46
      %p48 = scmp.ne.s32.totalorder %s34, %s35
      %p49 = scmp.eq.s32.totalorder %s15, 1
      %p50 = por %p48, %p49
      %p52 = scmp.ne.s32.totalorder %s35, %s51
      %p53 = scmp.eq.s32.totalorder %s15, 0
      %p54 = por %p52, %p53
      %s55 = ssub.s32 %s16, %s28
      %p56 = scmp.eq.s32.totalorder %s55, 0
      %s58 = sadd.s32 %s57, 1
      %s59 = scalar_select %p56, %s57, %s58
      %p62 = pneg %p56
      %p63 = scmp.eq.s32.totalorder %s9, 1
      %p64 = por %p62, %p63
      %p65 = scmp.ne.s32.totalorder %s57, %s60
      %p66 = scmp.eq.s32.totalorder %s9, 0
      %p67 = por %p65, %p66
      %p68 = scmp.ne.s32.totalorder %s57, %s60
      %p69 = scmp.eq.s32.totalorder %s14, 1
      %p70 = por %p68, %p69
      %p71 = scmp.ne.s32.totalorder %s60, %s61
      %p72 = scmp.eq.s32.totalorder %s14, 0
      %p73 = por %p71, %p72
      %p74 = scmp.ne.s32.totalorder %s60, %s61
      %p75 = scmp.eq.s32.totalorder %s15, 1
      %p76 = por %p74, %p75
      %p78 = scmp.ne.s32.totalorder %s61, %s77
      %p79 = scmp.eq.s32.totalorder %s15, 0
      %p80 = por %p78, %p79
      %s81 = ssub.s32 %s17, %s24
      %p82 = scmp.eq.s32.totalorder %s81, 0
      %s84 = sadd.s32 %s83, 1
      %s85 = scalar_select %p82, %s83, %s84
      %p88 = pneg %p82
      %p89 = scmp.eq.s32.totalorder %s9, 1
      %p90 = por %p88, %p89
      %p91 = scmp.ne.s32.totalorder %s83, %s86
      %p92 = scmp.eq.s32.totalorder %s9, 0
      %p93 = por %p91, %p92
      %p94 = scmp.ne.s32.totalorder %s83, %s86
      %p95 = scmp.eq.s32.totalorder %s14, 1
      %p96 = por %p94, %p95
      %p97 = scmp.ne.s32.totalorder %s86, %s87
      %p98 = scmp.eq.s32.totalorder %s14, 0
      %p99 = por %p97, %p98
      %p100 = scmp.ne.s32.totalorder %s86, %s87
      %p101 = scmp.eq.s32.totalorder %s15, 1
      %p102 = por %p100, %p101
      %p104 = scmp.ne.s32.totalorder %s87, %s103
      %p105 = scmp.eq.s32.totalorder %s15, 0
      %p106 = por %p104, %p105
      %s107 = ssub.s32 %s16, %s28
      %s108 = ssub.s32 %s17, %s24
      %s109 = sor.u32 %s107, %s108
      %p110 = scmp.eq.s32.totalorder %s109, 0
      %s112 = sadd.s32 %s111, 1
      %s113 = scalar_select %p110, %s111, %s112
      %p116 = pneg %p110
      %p117 = scmp.eq.s32.totalorder %s9, 1
      %p118 = por %p116, %p117
      %p119 = scmp.ne.s32.totalorder %s111, %s114
      %p120 = scmp.eq.s32.totalorder %s9, 0
      %p121 = por %p119, %p120
      %p122 = scmp.ne.s32.totalorder %s111, %s114
      %p123 = scmp.eq.s32.totalorder %s14, 1
      %p124 = por %p122, %p123
      %p125 = scmp.ne.s32.totalorder %s114, %s115
      %p126 = scmp.eq.s32.totalorder %s14, 0
      %p127 = por %p125, %p126
      %p128 = scmp.ne.s32.totalorder %s114, %s115
      %p129 = scmp.eq.s32.totalorder %s15, 1
      %p130 = por %p128, %p129
      %p132 = scmp.ne.s32.totalorder %s115, %s131
      %p133 = scmp.eq.s32.totalorder %s15, 0
      %p134 = por %p132, %p133
      %p135 = scmp.le.s32.totalorder 1, %s9
      %p136 = scmp.lt.s32.totalorder %s9, 3
      %p137 = pnand %p135, %p136
      %p138 = pneg %p137
      // Predicated region
      $region9: #{ifft_module.1} parent=5 // pred_check
        _
      $region10: #{ifft_module.1} parent=5 // pred_check_branch
        %140 = sbr.rel (%p137) target = $region12
      $region11: #{ifft_module.1} parent=5 // pred_region
        %s141 = ssub.s32 %s9, 1
        // Predicated region
        $region13: #{ifft_module.1} parent=11 // pred_check
          %p142 = pneg %p47
        $region14: #{ifft_module.1} parent=11 // pred_check_branch
          %144 = sbr.rel (%p142) target = $region16
        $region15: #{ifft_module.1} parent=11 // pred_region
          %p145 = scmp.lt.s32.totalorder %s18, 0
          %s146 = scalar_select %p145, %s18, 0
          %s147 = smul.addr %s146, 2
          %s148 = smul.addr %s147, 8
          %s149 = scalar_lea.vmem %s0, %s148
        $region16: #{ifft_module.1} parent=11 // pred_fallthru
          _
        // Predicated region
        $region17: #{ifft_module.1} parent=11 // pred_check
          %p150 = pneg %p73
        $region18: #{ifft_module.1} parent=11 // pred_check_branch
          %152 = sbr.rel (%p150) target = $region20
        $region19: #{ifft_module.1} parent=11 // pred_region
          %p153 = scmp.lt.s32.totalorder %s18, 0
          %s154 = scalar_select %p153, %s18, 0
          %s155 = smul.addr %s154, 2
          %s156 = smul.addr %s155, 8
          %s157 = scalar_lea.vmem %s1, %s156
        $region20: #{ifft_module.1} parent=11 // pred_fallthru
          _
        // Predicated region
        $region21: #{ifft_module.1} parent=11 // pred_check
          %p158 = pneg %p99
        $region22: #{ifft_module.1} parent=11 // pred_check_branch
          %160 = sbr.rel (%p158) target = $region24
        $region23: #{ifft_module.1} parent=11 // pred_region
          %s161 = smul.addr %s19, 8
          %s162 = scalar_lea.vmem %s2, %s161
          // Predicated region
          $region25: #{ifft_module.1} parent=23 // pred_check
            _
          $region26: #{ifft_module.1} parent=23 // pred_check_branch
            %164 = sbr.rel (0) target = $region28
          $region27: #{ifft_module.1} parent=23 // pred_region
            // Predicated region
            $region29: #{ifft_module.1} parent=27 // pred_check
              _
            $region30: #{ifft_module.1} parent=27 // pred_check_branch
              %166 = sbr.rel (0) target = $region32
            $region31: #{ifft_module.1} parent=27 // pred_region
              // Predicated region
              $region44: #{ifft_module.1} parent=31 // pred_check
                _
              $region45: #{ifft_module.1} parent=31 // pred_check_branch
                %307 = sbr.rel (0) target = $region47
              $region46: #{ifft_module.1} parent=31 // pred_region
                loop: start=0, step=1, limit=1
                $region48: #{ifft_module.1} parent=46 // loop_pre_header
                  _
                $region49: #{ifft_module.1} parent=46 // loop_header
                  %s309 = sphi 0, %s313
                  %p310 = scmp.ge.s32.totalorder %s309, 1
                  %s314 = sphi %s162, %s162
                  %s315 = sphi [#allocation2], [#allocation2]
                $region50: #{ifft_module.1} parent=46 // loop_header_branch
                  %312 = sbr.rel (%p310) target = $region54
                $region51: #{ifft_module.1} parent=46 // loop_body
                  %v316 = vld [vmem:[%s314] sm:$0xff]
                  %317 = vst [vmem:[%s315] sm:$0xff] %v316
                  %v318 = vld [vmem:[%s314 + $0x10] sm:$0xff]
                  %319 = vst [vmem:[%s315 + $0x8] sm:$0xff] %v318
                  %v320 = vld [vmem:[%s314 + $0x20] sm:$0xff]
                  %321 = vst [vmem:[%s315 + $0x10] sm:$0xff] %v320
                  %v322 = vld [vmem:[%s314 + $0x30] sm:$0xff]
                  %323 = vst [vmem:[%s315 + $0x18] sm:$0xff] %v322
                  %v324 = vld [vmem:[%s314 + $0x40] sm:$0xff]
                  %325 = vst [vmem:[%s315 + $0x20] sm:$0xff] %v324
                  %v326 = vld [vmem:[%s314 + $0x50] sm:$0xff]
                  %327 = vst [vmem:[%s315 + $0x28] sm:$0xff] %v326
                  %v328 = vld [vmem:[%s314 + $0x60] sm:$0xff]
                  %329 = vst [vmem:[%s315 + $0x30] sm:$0xff] %v328
                  %v330 = vld [vmem:[%s314 + $0x70] sm:$0xff]
                  %331 = vst [vmem:[%s315 + $0x38] sm:$0xff] %v330
                  %v332 = vld [vmem:[%s314 + $0x80] sm:$0xff]
                  %333 = vst [vmem:[%s315 + $0x40] sm:$0xff] %v332
                  %v334 = vld [vmem:[%s314 + $0x90] sm:$0xff]
                  %335 = vst [vmem:[%s315 + $0x48] sm:$0xff] %v334
                  %v336 = vld [vmem:[%s314 + $0xa0] sm:$0xff]
                  %337 = vst [vmem:[%s315 + $0x50] sm:$0xff] %v336
                  %v338 = vld [vmem:[%s314 + $0xb0] sm:$0xff]
                  %339 = vst [vmem:[%s315 + $0x58] sm:$0xff] %v338
                  %v340 = vld [vmem:[%s314 + $0xc0] sm:$0xff]
                  %341 = vst [vmem:[%s315 + $0x60] sm:$0xff] %v340
                  %v342 = vld [vmem:[%s314 + $0xd0] sm:$0xff]
                  %343 = vst [vmem:[%s315 + $0x68] sm:$0xff] %v342
                  %v344 = vld [vmem:[%s314 + $0xe0] sm:$0xff]
                  %345 = vst [vmem:[%s315 + $0x70] sm:$0xff] %v344
                  %v346 = vld [vmem:[%s314 + $0xf0] sm:$0xff]
                  %347 = vst [vmem:[%s315 + $0x78] sm:$0xff] %v346
                  %v348 = vld [vmem:[%s314 + $0x100] sm:$0xff]
                  %349 = vst [vmem:[%s315 + $0x80] sm:$0xff] %v348
                  %v350 = vld [vmem:[%s314 + $0x110] sm:$0xff]
                  %351 = vst [vmem:[%s315 + $0x88] sm:$0xff] %v350
                  %v352 = vld [vmem:[%s314 + $0x120] sm:$0xff]
                  %353 = vst [vmem:[%s315 + $0x90] sm:$0xff] %v352
                  %v354 = vld [vmem:[%s314 + $0x130] sm:$0xff]
                  %355 = vst [vmem:[%s315 + $0x98] sm:$0xff] %v354
                  %v356 = vld [vmem:[%s314 + $0x140] sm:$0xff]
                  %357 = vst [vmem:[%s315 + $0xa0] sm:$0xff] %v356
                  %v358 = vld [vmem:[%s314 + $0x150] sm:$0xff]
                  %359 = vst [vmem:[%s315 + $0xa8] sm:$0xff] %v358
                  %v360 = vld [vmem:[%s314 + $0x160] sm:$0xff]
                  %361 = vst [vmem:[%s315 + $0xb0] sm:$0xff] %v360
                  %v362 = vld [vmem:[%s314 + $0x170] sm:$0xff]
                  %363 = vst [vmem:[%s315 + $0xb8] sm:$0xff] %v362
                  %v364 = vld [vmem:[%s314 + $0x180] sm:$0xff]
                  %365 = vst [vmem:[%s315 + $0xc0] sm:$0xff] %v364
                  %v366 = vld [vmem:[%s314 + $0x190] sm:$0xff]
                  %367 = vst [vmem:[%s315 + $0xc8] sm:$0xff] %v366
                  %v368 = vld [vmem:[%s314 + $0x1a0] sm:$0xff]
                  %369 = vst [vmem:[%s315 + $0xd0] sm:$0xff] %v368
                  %v370 = vld [vmem:[%s314 + $0x1b0] sm:$0xff]
                  %371 = vst [vmem:[%s315 + $0xd8] sm:$0xff] %v370
                  %v372 = vld [vmem:[%s314 + $0x1c0] sm:$0xff]
                  %373 = vst [vmem:[%s315 + $0xe0] sm:$0xff] %v372
                  %v374 = vld [vmem:[%s314 + $0x1d0] sm:$0xff]
                  %375 = vst [vmem:[%s315 + $0xe8] sm:$0xff] %v374
                  %v376 = vld [vmem:[%s314 + $0x1e0] sm:$0xff]
                  %377 = vst [vmem:[%s315 + $0xf0] sm:$0xff] %v376
                  %v378 = vld [vmem:[%s314 + $0x1f0] sm:$0xff]
                  %379 = vst [vmem:[%s315 + $0xf8] sm:$0xff] %v378
                  %v380 = vld [vmem:[%s314 + $0x200] sm:$0xff]
                  %381 = vst [vmem:[%s315 + $0x100] sm:$0xff] %v380
                  %v382 = vld [vmem:[%s314 + $0x210] sm:$0xff]
                  %383 = vst [vmem:[%s315 + $0x108] sm:$0xff] %v382
                  %v384 = vld [vmem:[%s314 + $0x220] sm:$0xff]
                  %385 = vst [vmem:[%s315 + $0x110] sm:$0xff] %v384
                  %v386 = vld [vmem:[%s314 + $0x230] sm:$0xff]
                  %387 = vst [vmem:[%s315 + $0x118] sm:$0xff] %v386
                  %v388 = vld [vmem:[%s314 + $0x240] sm:$0xff]
                  %389 = vst [vmem:[%s315 + $0x120] sm:$0xff] %v388
                  %v390 = vld [vmem:[%s314 + $0x250] sm:$0xff]
                  %391 = vst [vmem:[%s315 + $0x128] sm:$0xff] %v390
                  %v392 = vld [vmem:[%s314 + $0x260] sm:$0xff]
                  %393 = vst [vmem:[%s315 + $0x130] sm:$0xff] %v392
                  %v394 = vld [vmem:[%s314 + $0x270] sm:$0xff]
                  %395 = vst [vmem:[%s315 + $0x138] sm:$0xff] %v394
                  %v396 = vld [vmem:[%s314 + $0x280] sm:$0xff]
                  %397 = vst [vmem:[%s315 + $0x140] sm:$0xff] %v396
                  %v398 = vld [vmem:[%s314 + $0x290] sm:$0xff]
                  %399 = vst [vmem:[%s315 + $0x148] sm:$0xff] %v398
                  %v400 = vld [vmem:[%s314 + $0x2a0] sm:$0xff]
                  %401 = vst [vmem:[%s315 + $0x150] sm:$0xff] %v400
                  %v402 = vld [vmem:[%s314 + $0x2b0] sm:$0xff]
                  %403 = vst [vmem:[%s315 + $0x158] sm:$0xff] %v402
                  %v404 = vld [vmem:[%s314 + $0x2c0] sm:$0xff]
                  %405 = vst [vmem:[%s315 + $0x160] sm:$0xff] %v404
                  %v406 = vld [vmem:[%s314 + $0x2d0] sm:$0xff]
                  %407 = vst [vmem:[%s315 + $0x168] sm:$0xff] %v406
                  %v408 = vld [vmem:[%s314 + $0x2e0] sm:$0xff]
                  %409 = vst [vmem:[%s315 + $0x170] sm:$0xff] %v408
                  %v410 = vld [vmem:[%s314 + $0x2f0] sm:$0xff]
                  %411 = vst [vmem:[%s315 + $0x178] sm:$0xff] %v410
                  %v412 = vld [vmem:[%s314 + $0x300] sm:$0xff]
                  %413 = vst [vmem:[%s315 + $0x180] sm:$0xff] %v412
                  %v414 = vld [vmem:[%s314 + $0x310] sm:$0xff]
                  %415 = vst [vmem:[%s315 + $0x188] sm:$0xff] %v414
                  %v416 = vld [vmem:[%s314 + $0x320] sm:$0xff]
                  %417 = vst [vmem:[%s315 + $0x190] sm:$0xff] %v416
                  %v418 = vld [vmem:[%s314 + $0x330] sm:$0xff]
                  %419 = vst [vmem:[%s315 + $0x198] sm:$0xff] %v418
                  %v420 = vld [vmem:[%s314 + $0x340] sm:$0xff]
                  %421 = vst [vmem:[%s315 + $0x1a0] sm:$0xff] %v420
                  %v422 = vld [vmem:[%s314 + $0x350] sm:$0xff]
                  %423 = vst [vmem:[%s315 + $0x1a8] sm:$0xff] %v422
                  %v424 = vld [vmem:[%s314 + $0x360] sm:$0xff]
                  %425 = vst [vmem:[%s315 + $0x1b0] sm:$0xff] %v424
                  %v426 = vld [vmem:[%s314 + $0x370] sm:$0xff]
                  %427 = vst [vmem:[%s315 + $0x1b8] sm:$0xff] %v426
                  %v428 = vld [vmem:[%s314 + $0x380] sm:$0xff]
                  %429 = vst [vmem:[%s315 + $0x1c0] sm:$0xff] %v428
                  %v430 = vld [vmem:[%s314 + $0x390] sm:$0xff]
                  %431 = vst [vmem:[%s315 + $0x1c8] sm:$0xff] %v430
                  %v432 = vld [vmem:[%s314 + $0x3a0] sm:$0xff]
                  %433 = vst [vmem:[%s315 + $0x1d0] sm:$0xff] %v432
                  %v434 = vld [vmem:[%s314 + $0x3b0] sm:$0xff]
                  %435 = vst [vmem:[%s315 + $0x1d8] sm:$0xff] %v434
                  %v436 = vld [vmem:[%s314 + $0x3c0] sm:$0xff]
                  %437 = vst [vmem:[%s315 + $0x1e0] sm:$0xff] %v436
                  %v438 = vld [vmem:[%s314 + $0x3d0] sm:$0xff]
                  %439 = vst [vmem:[%s315 + $0x1e8] sm:$0xff] %v438
                  %v440 = vld [vmem:[%s314 + $0x3e0] sm:$0xff]
                  %441 = vst [vmem:[%s315 + $0x1f0] sm:$0xff] %v440
                  %v442 = vld [vmem:[%s314 + $0x3f0] sm:$0xff]
                  %443 = vst [vmem:[%s315 + $0x1f8] sm:$0xff] %v442
                $region52: #{ifft_module.1} parent=46 // loop_footer
                  %s313 = sadd.s32 1, %s309
                $region53: #{ifft_module.1} parent=46 // loop_footer_branch
                  %308 = sbr.rel target = $region49
                $region54: #{ifft_module.1} parent=46 // loop_exit
                  _
              $region47: #{ifft_module.1} parent=31 // pred_fallthru
                _
              // Predicated region
              $region55: #{ifft_module.1} parent=31 // pred_check
                _
              $region56: #{ifft_module.1} parent=31 // pred_check_branch
                %445 = sbr.rel target = $region58
              $region57: #{ifft_module.1} parent=31 // pred_region
                _
              $region58: #{ifft_module.1} parent=31 // pred_fallthru
                _
            $region32: #{ifft_module.1} parent=27 // pred_fallthru
              _
            // Predicated region
            $region33: #{ifft_module.1} parent=27 // pred_check
              _
            $region34: #{ifft_module.1} parent=27 // pred_check_branch
              %168 = sbr.rel target = $region36
            $region35: #{ifft_module.1} parent=27 // pred_region
              loop: start=0, step=1, limit=1
              $region37: #{ifft_module.1} parent=35 // loop_pre_header
                _
              $region38: #{ifft_module.1} parent=35 // loop_header
                %s171 = sphi 0, %s175
                %p172 = scmp.ge.s32.totalorder %s171, 1
                %s176 = sphi %s162, %s162
                %s177 = sphi [#allocation2], [#allocation2]
              $region39: #{ifft_module.1} parent=35 // loop_header_branch
                %174 = sbr.rel (%p172) target = $region43
              $region40: #{ifft_module.1} parent=35 // loop_body
                %v178 = vld [vmem:[%s176] sm:$0xff]
                %179 = vst [vmem:[%s177] sm:$0xff] %v178
                %v180 = vld [vmem:[%s176 + $0x10] sm:$0xff]
                %181 = vst [vmem:[%s177 + $0x8] sm:$0xff] %v180
                %v182 = vld [vmem:[%s176 + $0x20] sm:$0xff]
                %183 = vst [vmem:[%s177 + $0x10] sm:$0xff] %v182
                %v184 = vld [vmem:[%s176 + $0x30] sm:$0xff]
                %185 = vst [vmem:[%s177 + $0x18] sm:$0xff] %v184
                %v186 = vld [vmem:[%s176 + $0x40] sm:$0xff]
                %187 = vst [vmem:[%s177 + $0x20] sm:$0xff] %v186
                %v188 = vld [vmem:[%s176 + $0x50] sm:$0xff]
                %189 = vst [vmem:[%s177 + $0x28] sm:$0xff] %v188
                %v190 = vld [vmem:[%s176 + $0x60] sm:$0xff]
                %191 = vst [vmem:[%s177 + $0x30] sm:$0xff] %v190
                %v192 = vld [vmem:[%s176 + $0x70] sm:$0xff]
                %193 = vst [vmem:[%s177 + $0x38] sm:$0xff] %v192
                %v194 = vld [vmem:[%s176 + $0x80] sm:$0xff]
                %195 = vst [vmem:[%s177 + $0x40] sm:$0xff] %v194
                %v196 = vld [vmem:[%s176 + $0x90] sm:$0xff]
                %197 = vst [vmem:[%s177 + $0x48] sm:$0xff] %v196
                %v198 = vld [vmem:[%s176 + $0xa0] sm:$0xff]
                %199 = vst [vmem:[%s177 + $0x50] sm:$0xff] %v198
                %v200 = vld [vmem:[%s176 + $0xb0] sm:$0xff]
                %201 = vst [vmem:[%s177 + $0x58] sm:$0xff] %v200
                %v202 = vld [vmem:[%s176 + $0xc0] sm:$0xff]
                %203 = vst [vmem:[%s177 + $0x60] sm:$0xff] %v202
                %v204 = vld [vmem:[%s176 + $0xd0] sm:$0xff]
                %205 = vst [vmem:[%s177 + $0x68] sm:$0xff] %v204
                %v206 = vld [vmem:[%s176 + $0xe0] sm:$0xff]
                %207 = vst [vmem:[%s177 + $0x70] sm:$0xff] %v206
                %v208 = vld [vmem:[%s176 + $0xf0] sm:$0xff]
                %209 = vst [vmem:[%s177 + $0x78] sm:$0xff] %v208
                %v210 = vld [vmem:[%s176 + $0x100] sm:$0xff]
                %211 = vst [vmem:[%s177 + $0x80] sm:$0xff] %v210
                %v212 = vld [vmem:[%s176 + $0x110] sm:$0xff]
                %213 = vst [vmem:[%s177 + $0x88] sm:$0xff] %v212
                %v214 = vld [vmem:[%s176 + $0x120] sm:$0xff]
                %215 = vst [vmem:[%s177 + $0x90] sm:$0xff] %v214
                %v216 = vld [vmem:[%s176 + $0x130] sm:$0xff]
                %217 = vst [vmem:[%s177 + $0x98] sm:$0xff] %v216
                %v218 = vld [vmem:[%s176 + $0x140] sm:$0xff]
                %219 = vst [vmem:[%s177 + $0xa0] sm:$0xff] %v218
                %v220 = vld [vmem:[%s176 + $0x150] sm:$0xff]
                %221 = vst [vmem:[%s177 + $0xa8] sm:$0xff] %v220
                %v222 = vld [vmem:[%s176 + $0x160] sm:$0xff]
                %223 = vst [vmem:[%s177 + $0xb0] sm:$0xff] %v222
                %v224 = vld [vmem:[%s176 + $0x170] sm:$0xff]
                %225 = vst [vmem:[%s177 + $0xb8] sm:$0xff] %v224
                %v226 = vld [vmem:[%s176 + $0x180] sm:$0xff]
                %227 = vst [vmem:[%s177 + $0xc0] sm:$0xff] %v226
                %v228 = vld [vmem:[%s176 + $0x190] sm:$0xff]
                %229 = vst [vmem:[%s177 + $0xc8] sm:$0xff] %v228
                %v230 = vld [vmem:[%s176 + $0x1a0] sm:$0xff]
                %231 = vst [vmem:[%s177 + $0xd0] sm:$0xff] %v230
                %v232 = vld [vmem:[%s176 + $0x1b0] sm:$0xff]
                %233 = vst [vmem:[%s177 + $0xd8] sm:$0xff] %v232
                %v234 = vld [vmem:[%s176 + $0x1c0] sm:$0xff]
                %235 = vst [vmem:[%s177 + $0xe0] sm:$0xff] %v234
                %v236 = vld [vmem:[%s176 + $0x1d0] sm:$0xff]
                %237 = vst [vmem:[%s177 + $0xe8] sm:$0xff] %v236
                %v238 = vld [vmem:[%s176 + $0x1e0] sm:$0xff]
                %239 = vst [vmem:[%s177 + $0xf0] sm:$0xff] %v238
                %v240 = vld [vmem:[%s176 + $0x1f0] sm:$0xff]
                %241 = vst [vmem:[%s177 + $0xf8] sm:$0xff] %v240
                %v242 = vld [vmem:[%s176 + $0x200] sm:$0xff]
                %243 = vst [vmem:[%s177 + $0x100] sm:$0xff] %v242
                %v244 = vld [vmem:[%s176 + $0x210] sm:$0xff]
                %245 = vst [vmem:[%s177 + $0x108] sm:$0xff] %v244
                %v246 = vld [vmem:[%s176 + $0x220] sm:$0xff]
                %247 = vst [vmem:[%s177 + $0x110] sm:$0xff] %v246
                %v248 = vld [vmem:[%s176 + $0x230] sm:$0xff]
                %249 = vst [vmem:[%s177 + $0x118] sm:$0xff] %v248
                %v250 = vld [vmem:[%s176 + $0x240] sm:$0xff]
                %251 = vst [vmem:[%s177 + $0x120] sm:$0xff] %v250
                %v252 = vld [vmem:[%s176 + $0x250] sm:$0xff]
                %253 = vst [vmem:[%s177 + $0x128] sm:$0xff] %v252
                %v254 = vld [vmem:[%s176 + $0x260] sm:$0xff]
                %255 = vst [vmem:[%s177 + $0x130] sm:$0xff] %v254
                %v256 = vld [vmem:[%s176 + $0x270] sm:$0xff]
                %257 = vst [vmem:[%s177 + $0x138] sm:$0xff] %v256
                %v258 = vld [vmem:[%s176 + $0x280] sm:$0xff]
                %259 = vst [vmem:[%s177 + $0x140] sm:$0xff] %v258
                %v260 = vld [vmem:[%s176 + $0x290] sm:$0xff]
                %261 = vst [vmem:[%s177 + $0x148] sm:$0xff] %v260
                %v262 = vld [vmem:[%s176 + $0x2a0] sm:$0xff]
                %263 = vst [vmem:[%s177 + $0x150] sm:$0xff] %v262
                %v264 = vld [vmem:[%s176 + $0x2b0] sm:$0xff]
                %265 = vst [vmem:[%s177 + $0x158] sm:$0xff] %v264
                %v266 = vld [vmem:[%s176 + $0x2c0] sm:$0xff]
                %267 = vst [vmem:[%s177 + $0x160] sm:$0xff] %v266
                %v268 = vld [vmem:[%s176 + $0x2d0] sm:$0xff]
                %269 = vst [vmem:[%s177 + $0x168] sm:$0xff] %v268
                %v270 = vld [vmem:[%s176 + $0x2e0] sm:$0xff]
                %271 = vst [vmem:[%s177 + $0x170] sm:$0xff] %v270
                %v272 = vld [vmem:[%s176 + $0x2f0] sm:$0xff]
                %273 = vst [vmem:[%s177 + $0x178] sm:$0xff] %v272
                %v274 = vld [vmem:[%s176 + $0x300] sm:$0xff]
                %275 = vst [vmem:[%s177 + $0x180] sm:$0xff] %v274
                %v276 = vld [vmem:[%s176 + $0x310] sm:$0xff]
                %277 = vst [vmem:[%s177 + $0x188] sm:$0xff] %v276
                %v278 = vld [vmem:[%s176 + $0x320] sm:$0xff]
                %279 = vst [vmem:[%s177 + $0x190] sm:$0xff] %v278
                %v280 = vld [vmem:[%s176 + $0x330] sm:$0xff]
                %281 = vst [vmem:[%s177 + $0x198] sm:$0xff] %v280
                %v282 = vld [vmem:[%s176 + $0x340] sm:$0xff]
                %283 = vst [vmem:[%s177 + $0x1a0] sm:$0xff] %v282
                %v284 = vld [vmem:[%s176 + $0x350] sm:$0xff]
                %285 = vst [vmem:[%s177 + $0x1a8] sm:$0xff] %v284
                %v286 = vld [vmem:[%s176 + $0x360] sm:$0xff]
                %287 = vst [vmem:[%s177 + $0x1b0] sm:$0xff] %v286
                %v288 = vld [vmem:[%s176 + $0x370] sm:$0xff]
                %289 = vst [vmem:[%s177 + $0x1b8] sm:$0xff] %v288
                %v290 = vld [vmem:[%s176 + $0x380] sm:$0xff]
                %291 = vst [vmem:[%s177 + $0x1c0] sm:$0xff] %v290
                %v292 = vld [vmem:[%s176 + $0x390] sm:$0xff]
                %293 = vst [vmem:[%s177 + $0x1c8] sm:$0xff] %v292
                %v294 = vld [vmem:[%s176 + $0x3a0] sm:$0xff]
                %295 = vst [vmem:[%s177 + $0x1d0] sm:$0xff] %v294
                %v296 = vld [vmem:[%s176 + $0x3b0] sm:$0xff]
                %297 = vst [vmem:[%s177 + $0x1d8] sm:$0xff] %v296
                %v298 = vld [vmem:[%s176 + $0x3c0] sm:$0xff]
                %299 = vst [vmem:[%s177 + $0x1e0] sm:$0xff] %v298
                %v300 = vld [vmem:[%s176 + $0x3d0] sm:$0xff]
                %301 = vst [vmem:[%s177 + $0x1e8] sm:$0xff] %v300
                %v302 = vld [vmem:[%s176 + $0x3e0] sm:$0xff]
                %303 = vst [vmem:[%s177 + $0x1f0] sm:$0xff] %v302
                %v304 = vld [vmem:[%s176 + $0x3f0] sm:$0xff]
                %305 = vst [vmem:[%s177 + $0x1f8] sm:$0xff] %v304
              $region41: #{ifft_module.1} parent=35 // loop_footer
                %s175 = sadd.s32 1, %s171
              $region42: #{ifft_module.1} parent=35 // loop_footer_branch
                %170 = sbr.rel target = $region38
              $region43: #{ifft_module.1} parent=35 // loop_exit
                _
            $region36: #{ifft_module.1} parent=27 // pred_fallthru
              _
          $region28: #{ifft_module.1} parent=23 // pred_fallthru
            _
          %446 = vnop
        $region24: #{ifft_module.1} parent=11 // pred_fallthru
          _
      $region12: #{ifft_module.1} parent=5 // pred_fallthru
        _
      %p447 = scmp.lt.s32.totalorder %s9, 2
      // Predicated region
      $region59: #{ifft_module.1} parent=5 // pred_check
        %p448 = pneg %p447
      $region60: #{ifft_module.1} parent=5 // pred_check_branch
        %450 = sbr.rel (%p448) target = $region62
      $region61: #{ifft_module.1} parent=5 // pred_region
        _
      $region62: #{ifft_module.1} parent=5 // pred_fallthru
        _
      %p451 = scmp.le.s32.totalorder 1, %s9
      %p452 = scmp.lt.s32.totalorder %s9, 3
      %p453 = pnand %p451, %p452
      %p454 = pneg %p453
      // Predicated region
      $region63: #{ifft_module.1} parent=5 // pred_check
        _
      $region64: #{ifft_module.1} parent=5 // pred_check_branch
        %456 = sbr.rel (%p453) target = $region66
      $region65: #{ifft_module.1} parent=5 // pred_region
        %s457 = ssub.s32 %s9, 1
        // Predicated region
        $region67: #{ifft_module.1} parent=65 // pred_check
          %p458 = pneg %p99
        $region68: #{ifft_module.1} parent=65 // pred_check_branch
          %460 = sbr.rel (%p458) target = $region70
        $region69: #{ifft_module.1} parent=65 // pred_region
          _
        $region70: #{ifft_module.1} parent=65 // pred_fallthru
          _
        %p461 = scmp.lt.s32.totalorder %s18, 0
        %s462 = scalar_select %p461, %s18, 0
        %s463 = smul.addr %s462, 2
        %s464 = smul.addr %s463, 8
        %s465 = scalar_lea.vmem %s0, %s464
        %p466 = pneg %p47
        %p467 = pneg %p44
        %p468 = scmp.lt.s32.totalorder %s18, 0
        %s469 = scalar_select %p468, %s18, 0
        %s470 = smul.addr %s469, 2
        %s471 = smul.addr %s470, 8
        %s472 = scalar_lea.vmem %s1, %s471
        %p473 = pneg %p73
        %p474 = pneg %p70
        %p475 = pneg %p99
        %p476 = pneg %p96
        %p477 = pneg %p127
        %p478 = pneg %p124
        %p479 = scmp.lt.s32.totalorder %s18, 0
        %s480 = scalar_select %p479, %s18, 0
        %p481 = scmp.lt.s32.totalorder %s19, 1
        %s482 = scalar_select %p481, %s19, 1
        %s483 = smul.addr %s480, 2
        %s484 = sadd.s32 %s482, %s483
        %s485 = smul.addr %s484, 8
        %s486 = scalar_lea.vmem %s3, %s485
        %p487 = scmp.lt.s32.totalorder %s18, 0
        %s488 = scalar_select %p487, %s18, 0
        %s489 = smul.addr %s488, 2
        %s490 = smul.addr %s489, 8
        %s491 = scalar_lea.vmem %s0, %s490
        %p492 = scmp.lt.s32.totalorder %s18, 0
        %s493 = scalar_select %p492, %s18, 0
        %s494 = smul.addr %s493, 2
        %s495 = smul.addr %s494, 8
        %s496 = scalar_lea.vmem %s1, %s495
        %p497 = scmp.lt.s32.totalorder %s18, 0
        %s498 = scalar_select %p497, %s18, 0
        %p499 = scmp.lt.s32.totalorder %s19, 1
        %s500 = scalar_select %p499, %s19, 1
        %s501 = smul.addr %s498, 2
        %s502 = sadd.s32 %s500, %s501
        %s503 = smul.addr %s502, 8
        %s504 = scalar_lea.vmem %s3, %s503
        %v505 = vld [vmem:[%s491] sm:$0xff]
        %v506 = vld [vmem:[%s491 + $0x8] sm:$0xff]
        %v507 = vadd.f32 %v505, 1e-10
        %v508 = vadd.f32 %v506, 1e-10
        %v509 = vmul.f32 %v507, 1.442695
        %v510 = vpow.pop %v509
        %v511 = vmul.f32 %v508, 1.442695
        %v512 = vpow.pop %v511
        %v513 = vld [vmem:[%s496] sm:$0xff]
        %v514 = vld [vmem:[%s496 + $0x8] sm:$0xff]
        %v515 = vadd.f32 %v513, 1e-10
        %v516 = vadd.f32 %v514, 1e-10
        %v517 = vand.u32 2147483647, %v515
        %vm518 = vcmp.le.f32.partialorder %v517, 0.7853982
        %vm519 = vcmp.lt.s32.totalorder %v515, 0
        %v520 = vand.u32 %v515, 2139095040
        %v521 = vshrl.u32 %v520, 23
        %v522 = vsub.s32 %v521, 127
        %v523 = vand.u32 2147483647, %v515
        %v524 = vand.u32 %v523, 8388607
        %v525 = vor.u32 %v524, 8388608
        %v526 = vsub.s32 0, %v525
        %v527 = vadd.s32 %v522, 1
        %vm528 = vcmp.gt.s32.totalorder %v527, 0
        %v529 = vsel %vm528, %v527, 0
        %v530 = vshrl.u32 %v529, 5
        %v531 = vand.u32 %v529, 31
        %v532 = vsub.s32 32, %v531
        %v533 = vshrl.u32 683565275, %v532
        %v534 = vshll.u32 683565275, %v531
        %v535 = vshrl.u32 2475754826, %v532
        %v536 = vor.u32 %v534, %v535
        %v537 = vshll.u32 2475754826, %v531
        %v538 = vshrl.u32 2131351028, %v532
        %v539 = vor.u32 %v537, %v538
        %v540 = vshll.u32 2131351028, %v531
        %v541 = vshrl.u32 2102212464, %v532
        %v542 = vor.u32 %v540, %v541
        %v543 = vshll.u32 2102212464, %v531
        %v544 = vshrl.u32 920167782, %v532
        %v545 = vor.u32 %v543, %v544
        %v546 = vshll.u32 920167782, %v531
        %v547 = vshrl.u32 1326507024, %v532
        %v548 = vor.u32 %v546, %v547
        %vm549 = vcmp.lt.s32.totalorder %v530, 1
        %vm550 = vcmp.lt.s32.totalorder %v530, 2
        %vm551 = vcmp.lt.s32.totalorder %v530, 3
        %vm552 = vcmp.lt.s32.totalorder %v530, 4
        %v553 = vsel %vm549, %v533, %v536
        %v554 = vsel %vm552, %v542, 2102212464
        %v555 = vsel %vm551, %v539, %v554
        %v556 = vsel %vm550, %v553, %v555
        %v557 = vsel %vm549, %v536, %v539
        %v558 = vsel %vm552, %v545, 920167782
        %v559 = vsel %vm551, %v542, %v558
        %v560 = vsel %vm550, %v557, %v559
        %v561 = vsel %vm549, %v539, %v542
        %v562 = vsel %vm552, %v548, 1326507024
        %v563 = vsel %vm551, %v545, %v562
        %v564 = vsel %vm550, %v561, %v563
        %v565 = vshll.u32 %v525, 8
        %v566 = vmul.u32.u64.compose %v565, %v564
        %v567 = vextract.low.u32 %v566
        %v568 = vextract.high.u32 %v566
        %v569 = vmul.u32.u64.compose %v565, %v560
        %v570 = vextract.low.u32 %v569
        %v571 = vextract.high.u32 %v569
        %v572 = vmul.u32 %v565, %v556
        %v573 = vadd.s32 %v568, %v570
        %vm574 = vc.u32 %v568, %v570
        %v575 = vadd.s32 %v571, 1
        %v576 = vsel %vm574, %v575, %v571
        %v577 = vadd.s32 %v572, %v576
        %v578 = vadd.s32 %v577, 536870912
        %v579 = vshrl.u32 %v578, 30
        %v580 = vshll.u32 %v579, 30
        %v581 = vsub.s32 %v577, %v580
        %vm582 = vcmp.lt.s32.totalorder %v581, 0
        %v583 = vsub.s32 0, %v581
        %v584 = vsel %vm582, %v583, %v581
        %v585 = vclz %v584
        %v586 = vsub.s32 %v585, 2
        %vm587 = vcmp.gt.s32.totalorder 0, %v586
        %v588 = vsel %vm587, 0, %v586
        %v589 = vsub.s32 32, %v588
        %v590 = vshll.u32 %v581, %v588
        %v591 = vshrl.u32 %v573, %v589
        %v592 = vor.u32 %v590, %v591
        %v593 = vsub.s32 4294967266, %v588
        %v594 = vadd.s32 %v593, 127
        %v595 = vshll.u32 %v594, 23
        %v596 = vor.u32 4788187, %v595
        %v597 = vand.u32 2147483647, %v596
        %v599 = vcvt.s32.f32 %v592
        %v600 = vmul.f32 %v599, %v597
        %v601 = vxor.u32 %v600, 2147483648
        %v602 = vsel %vm519, %v601, %v600
        %v603 = vsub.s32 4, %v579
        %v604 = vsel %vm519, %v603, %v579
        %v605 = vsel %vm518, %v515, %v602
        %v606 = vsel %vm518, 0, %v604
        %v607 = vcosq.f32.pop %v605
        %v608 = vsinq.f32.pop %v605
        %vm609 = vweird.f32 %v515
        %v610 = vand.u32 %v606, 3
        %vm611 = vcmp.lt.s32.totalorder %v610, 2
        %vm612 = vcmp.eq.s32.totalorder %v610, 0
        %v613 = vxor.u32 %v608, 2147483648
        %v614 = vsel %vm612, %v607, %v613
        %vm615 = vcmp.eq.s32.totalorder %v610, 2
        %v616 = vxor.u32 %v607, 2147483648
        %v617 = vsel %vm615, %v616, %v608
        %v618 = vsel %vm611, %v614, %v617
        %v619 = vsel %vm609, nan, %v618
        %v620 = vand.u32 2147483647, %v516
        %vm621 = vcmp.le.f32.partialorder %v620, 0.7853982
        %vm622 = vcmp.lt.s32.totalorder %v516, 0
        %v623 = vand.u32 %v516, 2139095040
        %v624 = vshrl.u32 %v623, 23
        %v625 = vsub.s32 %v624, 127
        %v626 = vand.u32 2147483647, %v516
        %v627 = vand.u32 %v626, 8388607
        %v628 = vor.u32 %v627, 8388608
        %v629 = vsub.s32 0, %v628
        %v630 = vadd.s32 %v625, 1
        %vm631 = vcmp.gt.s32.totalorder %v630, 0
        %v632 = vsel %vm631, %v630, 0
        %v633 = vshrl.u32 %v632, 5
        %v634 = vand.u32 %v632, 31
        %v635 = vsub.s32 32, %v634
        %v636 = vshrl.u32 683565275, %v635
        %v637 = vshll.u32 683565275, %v634
        %v638 = vshrl.u32 2475754826, %v635
        %v639 = vor.u32 %v637, %v638
        %v640 = vshll.u32 2475754826, %v634
        %v641 = vshrl.u32 2131351028, %v635
        %v642 = vor.u32 %v640, %v641
        %v643 = vshll.u32 2131351028, %v634
        %v644 = vshrl.u32 2102212464, %v635
        %v645 = vor.u32 %v643, %v644
        %v646 = vshll.u32 2102212464, %v634
        %v647 = vshrl.u32 920167782, %v635
        %v648 = vor.u32 %v646, %v647
        %v649 = vshll.u32 920167782, %v634
        %v650 = vshrl.u32 1326507024, %v635
        %v651 = vor.u32 %v649, %v650
        %vm652 = vcmp.lt.s32.totalorder %v633, 1
        %vm653 = vcmp.lt.s32.totalorder %v633, 2
        %vm654 = vcmp.lt.s32.totalorder %v633, 3
        %vm655 = vcmp.lt.s32.totalorder %v633, 4
        %v656 = vsel %vm652, %v636, %v639
        %v657 = vsel %vm655, %v645, 2102212464
        %v658 = vsel %vm654, %v642, %v657
        %v659 = vsel %vm653, %v656, %v658
        %v660 = vsel %vm652, %v639, %v642
        %v661 = vsel %vm655, %v648, 920167782
        %v662 = vsel %vm654, %v645, %v661
        %v663 = vsel %vm653, %v660, %v662
        %v664 = vsel %vm652, %v642, %v645
        %v665 = vsel %vm655, %v651, 1326507024
        %v666 = vsel %vm654, %v648, %v665
        %v667 = vsel %vm653, %v664, %v666
        %v668 = vshll.u32 %v628, 8
        %v669 = vmul.u32.u64.compose %v668, %v667
        %v670 = vextract.low.u32 %v669
        %v671 = vextract.high.u32 %v669
        %v672 = vmul.u32.u64.compose %v668, %v663
        %v673 = vextract.low.u32 %v672
        %v674 = vextract.high.u32 %v672
        %v675 = vmul.u32 %v668, %v659
        %v676 = vadd.s32 %v671, %v673
        %vm677 = vc.u32 %v671, %v673
        %v678 = vadd.s32 %v674, 1
        %v679 = vsel %vm677, %v678, %v674
        %v680 = vadd.s32 %v675, %v679
        %v681 = vadd.s32 %v680, 536870912
        %v682 = vshrl.u32 %v681, 30
        %v683 = vshll.u32 %v682, 30
        %v684 = vsub.s32 %v680, %v683
        %vm685 = vcmp.lt.s32.totalorder %v684, 0
        %v686 = vsub.s32 0, %v684
        %v687 = vsel %vm685, %v686, %v684
        %v688 = vclz %v687
        %v689 = vsub.s32 %v688, 2
        %vm690 = vcmp.gt.s32.totalorder 0, %v689
        %v691 = vsel %vm690, 0, %v689
        %v692 = vsub.s32 32, %v691
        %v693 = vshll.u32 %v684, %v691
        %v694 = vshrl.u32 %v676, %v692
        %v695 = vor.u32 %v693, %v694
        %v696 = vsub.s32 4294967266, %v691
        %v697 = vadd.s32 %v696, 127
        %v698 = vshll.u32 %v697, 23
        %v699 = vor.u32 4788187, %v698
        %v700 = vand.u32 2147483647, %v699
        %v702 = vcvt.s32.f32 %v695
        %v703 = vmul.f32 %v702, %v700
        %v704 = vxor.u32 %v703, 2147483648
        %v705 = vsel %vm622, %v704, %v703
        %v706 = vsub.s32 4, %v682
        %v707 = vsel %vm622, %v706, %v682
        %v708 = vsel %vm621, %v516, %v705
        %v709 = vsel %vm621, 0, %v707
        %v710 = vcosq.f32.pop %v708
        %v711 = vsinq.f32.pop %v708
        %vm712 = vweird.f32 %v516
        %v713 = vand.u32 %v709, 3
        %vm714 = vcmp.lt.s32.totalorder %v713, 2
        %vm715 = vcmp.eq.s32.totalorder %v713, 0
        %v716 = vxor.u32 %v711, 2147483648
        %v717 = vsel %vm715, %v710, %v716
        %vm718 = vcmp.eq.s32.totalorder %v713, 2
        %v719 = vxor.u32 %v710, 2147483648
        %v720 = vsel %vm718, %v719, %v711
        %v721 = vsel %vm714, %v717, %v720
        %v722 = vsel %vm712, nan, %v721
        %v723 = vmul.f32 %v510, %v619
        %v724 = vmul.f32 %v512, %v722
        %v725 = vand.u32 2147483647, %v515
        %vm726 = vcmp.le.f32.partialorder %v725, 0.7853982
        %vm727 = vcmp.lt.s32.totalorder %v515, 0
        %v728 = vand.u32 %v515, 2139095040
        %v729 = vshrl.u32 %v728, 23
        %v730 = vsub.s32 %v729, 127
        %v731 = vand.u32 2147483647, %v515
        %v732 = vand.u32 %v731, 8388607
        %v733 = vor.u32 %v732, 8388608
        %v734 = vsub.s32 0, %v733
        %v735 = vadd.s32 %v730, 1
        %vm736 = vcmp.gt.s32.totalorder %v735, 0
        %v737 = vsel %vm736, %v735, 0
        %v738 = vshrl.u32 %v737, 5
        %v739 = vand.u32 %v737, 31
        %v740 = vsub.s32 32, %v739
        %v741 = vshrl.u32 683565275, %v740
        %v742 = vshll.u32 683565275, %v739
        %v743 = vshrl.u32 2475754826, %v740
        %v744 = vor.u32 %v742, %v743
        %v745 = vshll.u32 2475754826, %v739
        %v746 = vshrl.u32 2131351028, %v740
        %v747 = vor.u32 %v745, %v746
        %v748 = vshll.u32 2131351028, %v739
        %v749 = vshrl.u32 2102212464, %v740
        %v750 = vor.u32 %v748, %v749
        %v751 = vshll.u32 2102212464, %v739
        %v752 = vshrl.u32 920167782, %v740
        %v753 = vor.u32 %v751, %v752
        %v754 = vshll.u32 920167782, %v739
        %v755 = vshrl.u32 1326507024, %v740
        %v756 = vor.u32 %v754, %v755
        %vm757 = vcmp.lt.s32.totalorder %v738, 1
        %vm758 = vcmp.lt.s32.totalorder %v738, 2
        %vm759 = vcmp.lt.s32.totalorder %v738, 3
        %vm760 = vcmp.lt.s32.totalorder %v738, 4
        %v761 = vsel %vm757, %v741, %v744
        %v762 = vsel %vm760, %v750, 2102212464
        %v763 = vsel %vm759, %v747, %v762
        %v764 = vsel %vm758, %v761, %v763
        %v765 = vsel %vm757, %v744, %v747
        %v766 = vsel %vm760, %v753, 920167782
        %v767 = vsel %vm759, %v750, %v766
        %v768 = vsel %vm758, %v765, %v767
        %v769 = vsel %vm757, %v747, %v750
        %v770 = vsel %vm760, %v756, 1326507024
        %v771 = vsel %vm759, %v753, %v770
        %v772 = vsel %vm758, %v769, %v771
        %v773 = vshll.u32 %v733, 8
        %v774 = vmul.u32.u64.compose %v773, %v772
        %v775 = vextract.low.u32 %v774
        %v776 = vextract.high.u32 %v774
        %v777 = vmul.u32.u64.compose %v773, %v768
        %v778 = vextract.low.u32 %v777
        %v779 = vextract.high.u32 %v777
        %v780 = vmul.u32 %v773, %v764
        %v781 = vadd.s32 %v776, %v778
        %vm782 = vc.u32 %v776, %v778
        %v783 = vadd.s32 %v779, 1
        %v784 = vsel %vm782, %v783, %v779
        %v785 = vadd.s32 %v780, %v784
        %v786 = vadd.s32 %v785, 536870912
        %v787 = vshrl.u32 %v786, 30
        %v788 = vshll.u32 %v787, 30
        %v789 = vsub.s32 %v785, %v788
        %vm790 = vcmp.lt.s32.totalorder %v789, 0
        %v791 = vsub.s32 0, %v789
        %v792 = vsel %vm790, %v791, %v789
        %v793 = vclz %v792
        %v794 = vsub.s32 %v793, 2
        %vm795 = vcmp.gt.s32.totalorder 0, %v794
        %v796 = vsel %vm795, 0, %v794
        %v797 = vsub.s32 32, %v796
        %v798 = vshll.u32 %v789, %v796
        %v799 = vshrl.u32 %v781, %v797
        %v800 = vor.u32 %v798, %v799
        %v801 = vsub.s32 4294967266, %v796
        %v802 = vadd.s32 %v801, 127
        %v803 = vshll.u32 %v802, 23
        %v804 = vor.u32 4788187, %v803
        %v805 = vand.u32 2147483647, %v804
        %v807 = vcvt.s32.f32 %v800
        %v808 = vmul.f32 %v807, %v805
        %v809 = vxor.u32 %v808, 2147483648
        %v810 = vsel %vm727, %v809, %v808
        %v811 = vsub.s32 4, %v787
        %v812 = vsel %vm727, %v811, %v787
        %v813 = vsel %vm726, %v515, %v810
        %v814 = vsel %vm726, 0, %v812
        %v815 = vcosq.f32.pop %v813
        %v816 = vsinq.f32.pop %v813
        %vm817 = vweird.f32 %v515
        %v818 = vadd.s32 %v814, 3
        %v819 = vand.u32 %v818, 3
        %vm820 = vcmp.lt.s32.totalorder %v819, 2
        %vm821 = vcmp.eq.s32.totalorder %v819, 0
        %v822 = vxor.u32 %v816, 2147483648
        %v823 = vsel %vm821, %v815, %v822
        %vm824 = vcmp.eq.s32.totalorder %v819, 2
        %v825 = vxor.u32 %v815, 2147483648
        %v826 = vsel %vm824, %v825, %v816
        %v827 = vsel %vm820, %v823, %v826
        %v828 = vsel %vm817, nan, %v827
        %v829 = vand.u32 2147483647, %v516
        %vm830 = vcmp.le.f32.partialorder %v829, 0.7853982
        %vm831 = vcmp.lt.s32.totalorder %v516, 0
        %v832 = vand.u32 %v516, 2139095040
        %v833 = vshrl.u32 %v832, 23
        %v834 = vsub.s32 %v833, 127
        %v835 = vand.u32 2147483647, %v516
        %v836 = vand.u32 %v835, 8388607
        %v837 = vor.u32 %v836, 8388608
        %v838 = vsub.s32 0, %v837
        %v839 = vadd.s32 %v834, 1
        %vm840 = vcmp.gt.s32.totalorder %v839, 0
        %v841 = vsel %vm840, %v839, 0
        %v842 = vshrl.u32 %v841, 5
        %v843 = vand.u32 %v841, 31
        %v844 = vsub.s32 32, %v843
        %v845 = vshrl.u32 683565275, %v844
        %v846 = vshll.u32 683565275, %v843
        %v847 = vshrl.u32 2475754826, %v844
        %v848 = vor.u32 %v846, %v847
        %v849 = vshll.u32 2475754826, %v843
        %v850 = vshrl.u32 2131351028, %v844
        %v851 = vor.u32 %v849, %v850
        %v852 = vshll.u32 2131351028, %v843
        %v853 = vshrl.u32 2102212464, %v844
        %v854 = vor.u32 %v852, %v853
        %v855 = vshll.u32 2102212464, %v843
        %v856 = vshrl.u32 920167782, %v844
        %v857 = vor.u32 %v855, %v856
        %v858 = vshll.u32 920167782, %v843
        %v859 = vshrl.u32 1326507024, %v844
        %v860 = vor.u32 %v858, %v859
        %vm861 = vcmp.lt.s32.totalorder %v842, 1
        %vm862 = vcmp.lt.s32.totalorder %v842, 2
        %vm863 = vcmp.lt.s32.totalorder %v842, 3
        %vm864 = vcmp.lt.s32.totalorder %v842, 4
        %v865 = vsel %vm861, %v845, %v848
        %v866 = vsel %vm864, %v854, 2102212464
        %v867 = vsel %vm863, %v851, %v866
        %v868 = vsel %vm862, %v865, %v867
        %v869 = vsel %vm861, %v848, %v851
        %v870 = vsel %vm864, %v857, 920167782
        %v871 = vsel %vm863, %v854, %v870
        %v872 = vsel %vm862, %v869, %v871
        %v873 = vsel %vm861, %v851, %v854
        %v874 = vsel %vm864, %v860, 1326507024
        %v875 = vsel %vm863, %v857, %v874
        %v876 = vsel %vm862, %v873, %v875
        %v877 = vshll.u32 %v837, 8
        %v878 = vmul.u32.u64.compose %v877, %v876
        %v879 = vextract.low.u32 %v878
        %v880 = vextract.high.u32 %v878
        %v881 = vmul.u32.u64.compose %v877, %v872
        %v882 = vextract.low.u32 %v881
        %v883 = vextract.high.u32 %v881
        %v884 = vmul.u32 %v877, %v868
        %v885 = vadd.s32 %v880, %v882
        %vm886 = vc.u32 %v880, %v882
        %v887 = vadd.s32 %v883, 1
        %v888 = vsel %vm886, %v887, %v883
        %v889 = vadd.s32 %v884, %v888
        %v890 = vadd.s32 %v889, 536870912
        %v891 = vshrl.u32 %v890, 30
        %v892 = vshll.u32 %v891, 30
        %v893 = vsub.s32 %v889, %v892
        %vm894 = vcmp.lt.s32.totalorder %v893, 0
        %v895 = vsub.s32 0, %v893
        %v896 = vsel %vm894, %v895, %v893
        %v897 = vclz %v896
        %v898 = vsub.s32 %v897, 2
        %vm899 = vcmp.gt.s32.totalorder 0, %v898
        %v900 = vsel %vm899, 0, %v898
        %v901 = vsub.s32 32, %v900
        %v902 = vshll.u32 %v893, %v900
        %v903 = vshrl.u32 %v885, %v901
        %v904 = vor.u32 %v902, %v903
        %v905 = vsub.s32 4294967266, %v900
        %v906 = vadd.s32 %v905, 127
        %v907 = vshll.u32 %v906, 23
        %v908 = vor.u32 4788187, %v907
        %v909 = vand.u32 2147483647, %v908
        %v911 = vcvt.s32.f32 %v904
        %v912 = vmul.f32 %v911, %v909
        %v913 = vxor.u32 %v912, 2147483648
        %v914 = vsel %vm831, %v913, %v912
        %v915 = vsub.s32 4, %v891
        %v916 = vsel %vm831, %v915, %v891
        %v917 = vsel %vm830, %v516, %v914
        %v918 = vsel %vm830, 0, %v916
        %v919 = vcosq.f32.pop %v917
        %v920 = vsinq.f32.pop %v917
        %vm921 = vweird.f32 %v516
        %v922 = vadd.s32 %v918, 3
        %v923 = vand.u32 %v922, 3
        %vm924 = vcmp.lt.s32.totalorder %v923, 2
        %vm925 = vcmp.eq.s32.totalorder %v923, 0
        %v926 = vxor.u32 %v920, 2147483648
        %v927 = vsel %vm925, %v919, %v926
        %vm928 = vcmp.eq.s32.totalorder %v923, 2
        %v929 = vxor.u32 %v919, 2147483648
        %v930 = vsel %vm928, %v929, %v920
        %v931 = vsel %vm924, %v927, %v930
        %v932 = vsel %vm921, nan, %v931
        %v933 = vmul.f32 %v510, %v828
        %v934 = vmul.f32 %v512, %v932
        %v935 = vld [vmem:[#allocation2] sm:$0xff]
        %v936 = vld [vmem:[#allocation2 + $0x8] sm:$0xff]
        %v937 = vld [vmem:[#allocation2 + $0x10] sm:$0xff]
        %v938 = vld [vmem:[#allocation2 + $0x18] sm:$0xff]
        %v939 = vld [vmem:[#allocation2 + $0x20] sm:$0xff]
        %v940 = vld [vmem:[#allocation2 + $0x28] sm:$0xff]
        %v941 = vld [vmem:[#allocation2 + $0x30] sm:$0xff]
        %v942 = vld [vmem:[#allocation2 + $0x38] sm:$0xff]
        %v943 = vld [vmem:[#allocation2 + $0x40] sm:$0xff]
        %v944 = vld [vmem:[#allocation2 + $0x48] sm:$0xff]
        %v945 = vld [vmem:[#allocation2 + $0x50] sm:$0xff]
        %v946 = vld [vmem:[#allocation2 + $0x58] sm:$0xff]
        %v947 = vld [vmem:[#allocation2 + $0x60] sm:$0xff]
        %v948 = vld [vmem:[#allocation2 + $0x68] sm:$0xff]
        %v949 = vld [vmem:[#allocation2 + $0x70] sm:$0xff]
        %v950 = vld [vmem:[#allocation2 + $0x78] sm:$0xff]
        %v951 = vld [vmem:[#allocation2 + $0x80] sm:$0xff]
        %v952 = vld [vmem:[#allocation2 + $0x88] sm:$0xff]
        %v953 = vld [vmem:[#allocation2 + $0x90] sm:$0xff]
        %v954 = vld [vmem:[#allocation2 + $0x98] sm:$0xff]
        %v955 = vld [vmem:[#allocation2 + $0xa0] sm:$0xff]
        %v956 = vld [vmem:[#allocation2 + $0xa8] sm:$0xff]
        %v957 = vld [vmem:[#allocation2 + $0xb0] sm:$0xff]
        %v958 = vld [vmem:[#allocation2 + $0xb8] sm:$0xff]
        %v959 = vld [vmem:[#allocation2 + $0xc0] sm:$0xff]
        %v960 = vld [vmem:[#allocation2 + $0xc8] sm:$0xff]
        %v961 = vld [vmem:[#allocation2 + $0xd0] sm:$0xff]
        %v962 = vld [vmem:[#allocation2 + $0xd8] sm:$0xff]
        %v963 = vld [vmem:[#allocation2 + $0xe0] sm:$0xff]
        %v964 = vld [vmem:[#allocation2 + $0xe8] sm:$0xff]
        %v965 = vld [vmem:[#allocation2 + $0xf0] sm:$0xff]
        %v966 = vld [vmem:[#allocation2 + $0xf8] sm:$0xff]
        %v967 = vld [vmem:[#allocation2 + $0x100] sm:$0xff]
        %v968 = vld [vmem:[#allocation2 + $0x108] sm:$0xff]
        %v969 = vld [vmem:[#allocation2 + $0x110] sm:$0xff]
        %v970 = vld [vmem:[#allocation2 + $0x118] sm:$0xff]
        %v971 = vld [vmem:[#allocation2 + $0x120] sm:$0xff]
        %v972 = vld [vmem:[#allocation2 + $0x128] sm:$0xff]
        %v973 = vld [vmem:[#allocation2 + $0x130] sm:$0xff]
        %v974 = vld [vmem:[#allocation2 + $0x138] sm:$0xff]
        %v975 = vld [vmem:[#allocation2 + $0x140] sm:$0xff]
        %v976 = vld [vmem:[#allocation2 + $0x148] sm:$0xff]
        %v977 = vld [vmem:[#allocation2 + $0x150] sm:$0xff]
        %v978 = vld [vmem:[#allocation2 + $0x158] sm:$0xff]
        %v979 = vld [vmem:[#allocation2 + $0x160] sm:$0xff]
        %v980 = vld [vmem:[#allocation2 + $0x168] sm:$0xff]
        %v981 = vld [vmem:[#allocation2 + $0x170] sm:$0xff]
        %v982 = vld [vmem:[#allocation2 + $0x178] sm:$0xff]
        %v983 = vld [vmem:[#allocation2 + $0x180] sm:$0xff]
        %v984 = vld [vmem:[#allocation2 + $0x188] sm:$0xff]
        %v985 = vld [vmem:[#allocation2 + $0x190] sm:$0xff]
        %v986 = vld [vmem:[#allocation2 + $0x198] sm:$0xff]
        %v987 = vld [vmem:[#allocation2 + $0x1a0] sm:$0xff]
        %v988 = vld [vmem:[#allocation2 + $0x1a8] sm:$0xff]
        %v989 = vld [vmem:[#allocation2 + $0x1b0] sm:$0xff]
        %v990 = vld [vmem:[#allocation2 + $0x1b8] sm:$0xff]
        %v991 = vld [vmem:[#allocation2 + $0x1c0] sm:$0xff]
        %v992 = vld [vmem:[#allocation2 + $0x1c8] sm:$0xff]
        %v993 = vld [vmem:[#allocation2 + $0x1d0] sm:$0xff]
        %v994 = vld [vmem:[#allocation2 + $0x1d8] sm:$0xff]
        %v995 = vld [vmem:[#allocation2 + $0x1e0] sm:$0xff]
        %v996 = vld [vmem:[#allocation2 + $0x1e8] sm:$0xff]
        %v997 = vld [vmem:[#allocation2 + $0x1f0] sm:$0xff]
        %v998 = vld [vmem:[#allocation2 + $0x1f8] sm:$0xff]
        %999 = vmatprep.subr.mxu0 0.0
        %1000 = vmatpush1.msra.mxu0 %v935
        %1001 = vmatprep.subr.mxu0 0.0
        %1002 = vmatpush1.msra.mxu0 %v936
        %1003 = vmatprep.subr.mxu0 0.0
        %1004 = vmatpush1.msra.mxu0 %v937
        %1005 = vmatprep.subr.mxu0 0.0
        %1006 = vmatpush1.msra.mxu0 %v938
        %1007 = vmatprep.subr.mxu0 0.0
        %1008 = vmatpush1.msra.mxu0 %v939
        %1009 = vmatprep.subr.mxu0 0.0
        %1010 = vmatpush1.msra.mxu0 %v940
        %1011 = vmatprep.subr.mxu0 0.0
        %1012 = vmatpush1.msra.mxu0 %v941
        %1013 = vmatprep.subr.mxu0 0.0
        %1014 = vmatpush1.msra.mxu0 %v942
        %1015 = vmatprep.subr.mxu0 0.0
        %1016 = vmatpush1.msra.mxu0 %v943
        %1017 = vmatprep.subr.mxu0 0.0
        %1018 = vmatpush1.msra.mxu0 %v944
        %1019 = vmatprep.subr.mxu0 0.0
        %1020 = vmatpush1.msra.mxu0 %v945
        %1021 = vmatprep.subr.mxu0 0.0
        %1022 = vmatpush1.msra.mxu0 %v946
        %1023 = vmatprep.subr.mxu0 0.0
        %1024 = vmatpush1.msra.mxu0 %v947
        %1025 = vmatprep.subr.mxu0 0.0
        %1026 = vmatpush1.msra.mxu0 %v948
        %1027 = vmatprep.subr.mxu0 0.0
        %1028 = vmatpush1.msra.mxu0 %v949
        %1029 = vmatprep.subr.mxu0 0.0
        %1030 = vmatpush1.msra.mxu0 %v950
        %1031 = vmatprep.subr.mxu0 0.0
        %1032 = vmatpush1.msra.mxu0 %v951
        %1033 = vmatprep.subr.mxu0 0.0
        %1034 = vmatpush1.msra.mxu0 %v952
        %1035 = vmatprep.subr.mxu0 0.0
        %1036 = vmatpush1.msra.mxu0 %v953
        %1037 = vmatprep.subr.mxu0 0.0
        %1038 = vmatpush1.msra.mxu0 %v954
        %1039 = vmatprep.subr.mxu0 0.0
        %1040 = vmatpush1.msra.mxu0 %v955
        %1041 = vmatprep.subr.mxu0 0.0
        %1042 = vmatpush1.msra.mxu0 %v956
        %1043 = vmatprep.subr.mxu0 0.0
        %1044 = vmatpush1.msra.mxu0 %v957
        %1045 = vmatprep.subr.mxu0 0.0
        %1046 = vmatpush1.msra.mxu0 %v958
        %1047 = vmatprep.subr.mxu0 0.0
        %1048 = vmatpush1.msra.mxu0 %v959
        %1049 = vmatprep.subr.mxu0 0.0
        %1050 = vmatpush1.msra.mxu0 %v960
        %1051 = vmatprep.subr.mxu0 0.0
        %1052 = vmatpush1.msra.mxu0 %v961
        %1053 = vmatprep.subr.mxu0 0.0
        %1054 = vmatpush1.msra.mxu0 %v962
        %1055 = vmatprep.subr.mxu0 0.0
        %1056 = vmatpush1.msra.mxu0 %v963
        %1057 = vmatprep.subr.mxu0 0.0
        %1058 = vmatpush1.msra.mxu0 %v964
        %1059 = vmatprep.subr.mxu0 0.0
        %1060 = vmatpush1.msra.mxu0 %v965
        %1061 = vmatprep.subr.mxu0 0.0
        %1062 = vmatpush1.msra.mxu0 %v966
        %1063 = vmatprep.mubr.f32.mxu0 %v724
        %1064 = vmatmul.mubr.f32.gmra.mrb[0].mxu0 %v723
        %v1065 = vpop.f32.mrb[0].mxu0
        %v1066 = vadd.f32 0.0, %v1065
        %v1067 = vpop.f32.mrb[0].mxu0
        %1068 = vdwg.mxu0
        %1069 = vmatprep.subr.mxu0 0.0
        %1070 = vmatpush1.msra.mxu0 %v967
        %1071 = vmatprep.subr.mxu0 0.0
        %1072 = vmatpush1.msra.mxu0 %v968
        %1073 = vmatprep.subr.mxu0 0.0
        %1074 = vmatpush1.msra.mxu0 %v969
        %1075 = vmatprep.subr.mxu0 0.0
        %1076 = vmatpush1.msra.mxu0 %v970
        %1077 = vmatprep.subr.mxu0 0.0
        %1078 = vmatpush1.msra.mxu0 %v971
        %1079 = vmatprep.subr.mxu0 0.0
        %1080 = vmatpush1.msra.mxu0 %v972
        %1081 = vmatprep.subr.mxu0 0.0
        %1082 = vmatpush1.msra.mxu0 %v973
        %1083 = vmatprep.subr.mxu0 0.0
        %1084 = vmatpush1.msra.mxu0 %v974
        %1085 = vmatprep.subr.mxu0 0.0
        %1086 = vmatpush1.msra.mxu0 %v975
        %1087 = vmatprep.subr.mxu0 0.0
        %1088 = vmatpush1.msra.mxu0 %v976
        %1089 = vmatprep.subr.mxu0 0.0
        %1090 = vmatpush1.msra.mxu0 %v977
        %1091 = vmatprep.subr.mxu0 0.0
        %1092 = vmatpush1.msra.mxu0 %v978
        %1093 = vmatprep.subr.mxu0 0.0
        %1094 = vmatpush1.msra.mxu0 %v979
        %1095 = vmatprep.subr.mxu0 0.0
        %1096 = vmatpush1.msra.mxu0 %v980
        %1097 = vmatprep.subr.mxu0 0.0
        %1098 = vmatpush1.msra.mxu0 %v981
        %1099 = vmatprep.subr.mxu0 0.0
        %1100 = vmatpush1.msra.mxu0 %v982
        %1101 = vmatprep.subr.mxu0 0.0
        %1102 = vmatpush1.msra.mxu0 %v983
        %1103 = vmatprep.subr.mxu0 0.0
        %1104 = vmatpush1.msra.mxu0 %v984
        %1105 = vmatprep.subr.mxu0 0.0
        %1106 = vmatpush1.msra.mxu0 %v985
        %1107 = vmatprep.subr.mxu0 0.0
        %1108 = vmatpush1.msra.mxu0 %v986
        %1109 = vmatprep.subr.mxu0 0.0
        %1110 = vmatpush1.msra.mxu0 %v987
        %1111 = vmatprep.subr.mxu0 0.0
        %1112 = vmatpush1.msra.mxu0 %v988
        %1113 = vmatprep.subr.mxu0 0.0
        %1114 = vmatpush1.msra.mxu0 %v989
        %1115 = vmatprep.subr.mxu0 0.0
        %1116 = vmatpush1.msra.mxu0 %v990
        %1117 = vmatprep.subr.mxu0 0.0
        %1118 = vmatpush1.msra.mxu0 %v991
        %1119 = vmatprep.subr.mxu0 0.0
        %1120 = vmatpush1.msra.mxu0 %v992
        %1121 = vmatprep.subr.mxu0 0.0
        %1122 = vmatpush1.msra.mxu0 %v993
        %1123 = vmatprep.subr.mxu0 0.0
        %1124 = vmatpush1.msra.mxu0 %v994
        %1125 = vmatprep.subr.mxu0 0.0
        %1126 = vmatpush1.msra.mxu0 %v995
        %1127 = vmatprep.subr.mxu0 0.0
        %1128 = vmatpush1.msra.mxu0 %v996
        %1129 = vmatprep.subr.mxu0 0.0
        %1130 = vmatpush1.msra.mxu0 %v997
        %1131 = vmatprep.subr.mxu0 0.0
        %1132 = vmatpush1.msra.mxu0 %v998
        %1133 = vmatprep.mubr.f32.mxu0 %v934
        %1134 = vmatmul.mubr.f32.gmra.mrb[0].mxu0 %v933
        %v1135 = vpop.f32.mrb[0].mxu0
        %v1136 = vadd.f32 %v1066, %v1135
        %v1137 = vpop.f32.mrb[0].mxu0
        %1138 = vdwg.mxu0
        %1139 = vst [vmem:[%s504] sm:$0xff] %v1136
        %p1140 = scmp.lt.s32.totalorder %s18, 0
        %s1141 = scalar_select %p1140, %s18, 0
        %p1142 = scmp.lt.s32.totalorder %s19, 1
        %s1143 = scalar_select %p1142, %s19, 1
        %s1144 = smul.addr %s1141, 2
        %s1145 = sadd.s32 %s1143, %s1144
        %s1146 = smul.addr %s1145, 8
        %s1147 = scalar_lea.vmem %s3, %s1146
        // Predicated region
        $region71: #{ifft_module.1} parent=65 // pred_check
          %p1148 = pneg %p124
        $region72: #{ifft_module.1} parent=65 // pred_check_branch
          %1150 = sbr.rel (%p1148) target = $region74
        $region73: #{ifft_module.1} parent=65 // pred_region
          _
        $region74: #{ifft_module.1} parent=65 // pred_fallthru
          _
      $region66: #{ifft_module.1} parent=5 // pred_fallthru
        _
      %p1151 = scmp.le.s32.totalorder 2, %s9
      // Predicated region
      $region75: #{ifft_module.1} parent=5 // pred_check
        %p1152 = pneg %p1151
      $region76: #{ifft_module.1} parent=5 // pred_check_branch
        %1154 = sbr.rel (%p1152) target = $region78
      $region77: #{ifft_module.1} parent=5 // pred_region
        %s1155 = ssub.s32 %s9, 2
        // Predicated region
        $region79: #{ifft_module.1} parent=77 // pred_check
          %p1156 = pneg %p130
        $region80: #{ifft_module.1} parent=77 // pred_check_branch
          %1158 = sbr.rel (%p1156) target = $region82
        $region81: #{ifft_module.1} parent=77 // pred_region
          %p1159 = scmp.lt.s32.totalorder %s20, 0
          %s1160 = scalar_select %p1159, %s20, 0
          %p1161 = scmp.lt.s32.totalorder %s21, 1
          %s1162 = scalar_select %p1161, %s21, 1
          %s1163 = smul.addr %s1160, 2
          %s1164 = sadd.s32 %s1162, %s1163
          %s1165 = smul.addr %s1164, 8
          %s1166 = scalar_lea.vmem %s3, %s1165
        $region82: #{ifft_module.1} parent=77 // pred_fallthru
          _
      $region78: #{ifft_module.1} parent=5 // pred_fallthru
        _
    $region6: #{ifft_module.1} parent=1 // loop_footer
      %s13 = sadd.s32 1, %s9
    $region7: #{ifft_module.1} parent=1 // loop_footer_branch
      %8 = sbr.rel target = $region3
    $region8: #{ifft_module.1} parent=1 // loop_exit
      _

</llo_original>
